<compile_context>
chip_gen: v5e
topology: v5e:2x2
jax: 0.10.0
libtpu: 0.0.40
codegen_flags: <defaults>
</compile_context>

<pallas_src>
import functools

import jax
import jax.numpy as jnp
from jax.experimental import pallas as pl
from jax.experimental.pallas import tpu as pltpu

EPS = 1e-5


def _vmem_limit_bytes():
    """Generation-aware scoped-VMEM cap.

    v5e/v6e: 128 MiB physical -> ~96 MiB scoped.  v7x: 64 MiB -> ~48 MiB.
    """
    cap = 128 * 1024 * 1024
    try:
        info = pltpu.get_tpu_info()
        cap = int(getattr(info, "vmem_capacity_bytes", cap) or cap)
    except Exception:
        pass
    return int(min(cap * 3 // 4, 96 * 1024 * 1024))


# ----------------------------- Pallas kernels ------------------------------

def _mm_bias_relu_kernel(x_ref, w_ref, b_ref, o_ref):
    # out = relu(x @ w' + b')    (BN scale already folded into w')
    acc = jnp.dot(x_ref[...], w_ref[...], preferred_element_type=jnp.float32)
    o_ref[...] = jnp.maximum(acc + b_ref[...], 0.0).astype(o_ref.dtype)


def _conv2_conv3_kernel(x_ref, w2_ref, b2_ref, w3_ref, b3_ref, res_ref,
                        o_ref, xpad_ref, acc_ref, *, depth, height, width):
    """grid = (N, D, 3); kd (conv2 depth tap) is the innermost reduction axis.

    x_ref   : (H, W, P)      conv1 output plane at depth clip(d + kd - 1)
    w2_ref  : (27, P, P)     full folded conv2 weight bank (constant block
                             index -> DMA'd into VMEM exactly once)
    res_ref : (H*W, C4)      residual tile (original input), fetched once per (n,d)
    o_ref   : (H*W, C4)      output tile.  NOTE: it is written only on the last
                             kd step; this is safe because Pallas flushes the
                             output block to HBM only when its block index
                             changes (it is constant across kd).
    xpad_ref: (H+2, W+2, P)  VMEM scratch: zero-halo padded copy of x_ref
    acc_ref : (H*W, P) f32   conv2 accumulator, persists across kd
    """
    kd = pl.program_id(2)
    dd = pl.program_id(1) + kd - 1                      # true depth of this tap
    valid = jnp.logical_and(dd >= 0, dd < depth)
    first = kd == 0
    hw = height * width

    @pl.when(first)
    def _():
        # (Re)zero the padded plane so its H/W halo is zero for this (n, d).
        xpad_ref[...] = jnp.zeros_like(xpad_ref)

    @pl.when(jnp.logical_and(first, jnp.logical_not(valid)))
    def _():
        # kd==0 tap is out of range (d == 0): nothing to add, just init acc.
        acc_ref[...] = jnp.zeros_like(acc_ref)

    @pl.when(valid)
    def _():
        # Build the zero-halo padded plane in VMEM (no HBM-side pad / im2col).
        xpad_ref[1:height + 1, 1:width + 1, :] = x_ref[...]

        part = None
        for kh in range(3):
            for kw in range(3):
                xs = xpad_ref[kh:kh + height, kw:kw + width, :].reshape(hw, -1)
                tap = kd * 9 + kh * 3 + kw              # dynamic (kd) leading index
                contrib = jnp.dot(xs, w2_ref[tap],
                                  preferred_element_type=jnp.float32)
                part = contrib if part is None else part + contrib

        @pl.when(first)
        def _():
            acc_ref[...] = part          # first tap: assign, no zero-init + add

        @pl.when(jnp.logical_not(first))
        def _():
            acc_ref[...] += part

    @pl.when(kd == pl.num_programs(2) - 1)
    def _():
        # BN2 (scale folded) bias + ReLU
        h2 = jnp.maximum(acc_ref[...] + b2_ref[...], 0.0)
        # fused conv3 (1x1x1) + BN3 bias + residual + ReLU epilogue
        y = jnp.dot(h2.astype(w3_ref.dtype), w3_ref[...],
                    preferred_element_type=jnp.float32)
        y = y + b3_ref[...] + res_ref[...].astype(jnp.float32)
        o_ref[...] = jnp.maximum(y, 0.0).astype(o_ref.dtype)


# ------------------------------ wrappers ------------------------------------

def pointwise_conv_bn_relu(x_vc, w, bias, *, tv=2048):
    """1x1x1 conv + BN(eval) + ReLU.  x_vc: [V, Cin], w: [Cin, Cout] (scale folded)."""
    V, cin = x_vc.shape
    cout = w.shape[1]
    tv = min(tv, V)
    if tv < V:
        tv = max(8, (tv // 8) * 8)
    grid = (pl.cdiv(V, tv),)

    cost = pl.CostEstimate(
        flops=int(2 * V * cin * cout),
        transcendentals=0,
        bytes_accessed=int((V * cin + V * cout) * x_vc.dtype.itemsize
                           + cin * cout * w.dtype.itemsize + cout * 4))

    return pl.pallas_call(
        _mm_bias_relu_kernel,
        grid_spec=pltpu.PrefetchScalarGridSpec(
            num_scalar_prefetch=0,
            grid=grid,
            in_specs=[
                pl.BlockSpec((tv, cin), lambda i: (i, 0)),
                pl.BlockSpec((cin, cout), lambda i: (0, 0)),
                pl.BlockSpec((1, cout), lambda i: (0, 0)),
            ],
            out_specs=pl.BlockSpec((tv, cout), lambda i: (i, 0)),
        ),
        out_shape=jax.ShapeDtypeStruct((V, cout), x_vc.dtype),
        compiler_params=pltpu.CompilerParams(
            dimension_semantics=("parallel",),
            vmem_limit_bytes=_vmem_limit_bytes()),
        cost_estimate=cost,
    )(x_vc, w, bias)


def conv3x3x3_conv1x1_fused(h1_cl, res_cl, w2f, b2, w3f, b3):
    """Fused: 3x3x3 conv + BN2 + ReLU + 1x1x1 conv + BN3 + residual + ReLU.

    h1_cl:  [N, D, H, W, P]   conv1 output (channels-last, unpadded)
    res_cl: [N, D, H, W, C4]  residual (original input, channels-last)
    w2f:    [27, P, P]        conv2 weights, BN2 scale folded, tap-major (kd,kh,kw)
    w3f:    [P, C4]           conv3 weights, BN3 scale folded
    """
    N, D, H, W, P = h1_cl.shape
    C4 = w3f.shape[-1]
    HW = H * W
    V = N * D * HW

    res = res_cl.reshape(N, D, HW, C4)                  # free (contiguous)
    isz = h1_cl.dtype.itemsize
    wsz = w2f.dtype.itemsize

    def h1_map(n, d, kd):
        # depth tap d + kd - 1, clamped in-bounds; out-of-range taps are
        # skipped inside the kernel via the validity mask.
        dd = jnp.minimum(jnp.maximum(d + kd - 1, 0), D - 1)
        return (n, dd, 0, 0, 0)

    cost = pl.CostEstimate(
        flops=int(2 * V * (27 * P * P + P * C4)),
        transcendentals=0,
        bytes_accessed=int(3 * V * P * isz              # h1 depth-halo re-read (~3x)
                           + V * C4 * isz               # residual read
                           + V * C4 * isz               # output write
                           + (w2f.size + w3f.size) * wsz
                           + (b2.size + b3.size) * 4))

    out = pl.pallas_call(
        functools.partial(_conv2_conv3_kernel, depth=D, height=H, width=W),
        grid_spec=pltpu.PrefetchScalarGridSpec(
            num_scalar_prefetch=0,
            grid=(N, D, 3),                              # kd reduction axis last
            in_specs=[
                # conv1 output plane for depth tap kd (clamped index)
                pl.BlockSpec((None, None, H, W, P), h1_map),
                # full conv2 weight bank: constant index -> fetched once
                pl.BlockSpec((27, P, P), lambda n, d, kd: (0, 0, 0)),
                pl.BlockSpec((1, P), lambda n, d, kd: (0, 0)),
                pl.BlockSpec((P, C4), lambda n, d, kd: (0, 0)),
                pl.BlockSpec((1, C4), lambda n, d, kd: (0, 0)),
                pl.BlockSpec((None, None, HW, C4), lambda n, d, kd: (n, d, 0, 0)),
            ],
            out_specs=pl.BlockSpec((None, None, HW, C4),
                                   lambda n, d, kd: (n, d, 0, 0)),
            scratch_shapes=[
                pltpu.VMEM((H + 2, W + 2, P), h1_cl.dtype),   # padded plane
                pltpu.VMEM((HW, P), jnp.float32),             # conv2 accumulator
            ],
        ),
        out_shape=jax.ShapeDtypeStruct((N, D, HW, C4), h1_cl.dtype),
        compiler_params=pltpu.CompilerParams(
            dimension_semantics=("parallel", "parallel", "arbitrary"),
            vmem_limit_bytes=_vmem_limit_bytes()),
        cost_estimate=cost,
    )(h1_cl, w2f, b2, w3f, b3, res)
    return out.reshape(N, D, H, W, C4)


# ------------------------------ parameters -----------------------------------

def fuse_bn(gamma, beta, mean, var):
    scale = gamma / jnp.sqrt(var + EPS)
    bias = beta - mean * scale
    return scale.astype(jnp.float32), bias.astype(jnp.float32)


def init_bottleneck_params(key, inplanes, planes, expansion=4):
    outplanes = planes * expansion
    ks = jax.random.split(key, 15)

    def w_init(k, shape, fan_in):
        return jax.random.normal(k, shape, jnp.float32) / jnp.sqrt(fan_in)

    w1 = w_init(ks[0], (inplanes, planes), inplanes)           # 1x1x1
    w2 = w_init(ks[1], (27, planes, planes), 27 * planes)      # 3x3x3 taps
    w3 = w_init(ks[2], (planes, outplanes), planes)            # 1x1x1

    def bn_init(kg, kb, km, kv, c):
        gamma = 1.0 + 0.1 * jax.random.normal(kg, (c,), jnp.float32)
        beta = 0.1 * jax.random.normal(kb, (c,), jnp.float32)
        mean = 0.1 * jax.random.normal(km, (c,), jnp.float32)
        var = jax.random.uniform(kv, (c,), jnp.float32, 0.5, 1.5)
        return fuse_bn(gamma, beta, mean, var)

    s1, b1 = bn_init(ks[3], ks[4], ks[5], ks[6], planes)
    s2, b2 = bn_init(ks[7], ks[8], ks[9], ks[10], planes)
    s3, b3 = bn_init(ks[11], ks[12], ks[13], ks[14], outplanes)
    return dict(w1=w1, w2=w2, w3=w3, s1=s1, b1=b1, s2=s2, b2=b2, s3=s3, b3=b3)


def prepare_params(params, compute_dtype=jnp.float32):
    """Fold BN(eval) scale into the conv weights and cast to compute dtype.

    bf16 weights/activations (f32 accumulation) are the recommended production
    setting on v6e/v7x; they also halve the VMEM held by the resident 27*P*P
    conv2 weight bank.
    """
    P = params["w1"].shape[1]
    C4 = params["w3"].shape[1]
    w1f = (params["w1"] * params["s1"][None, :]).astype(compute_dtype)
    w2f = (params["w2"] * params["s2"][None, None, :]).astype(compute_dtype)  # (27,P,P)
    w3f = (params["w3"] * params["s3"][None, :]).astype(compute_dtype)
    return dict(
        w1=w1f, b1=params["b1"].reshape(1, P).astype(jnp.float32),
        w2=w2f, b2=params["b2"].reshape(1, P).astype(jnp.float32),
        w3=w3f, b3=params["b3"].reshape(1, C4).astype(jnp.float32),
    )


# ------------------------------ forward ---------------------------------------

def bottleneck_forward_cl(x_cl, prep, *, tv=2048):
    """Channels-last forward.  x_cl: [N, D, H, W, Cin] -> [N, D, H, W, C4]."""
    N, D, H, W, Cin = x_cl.shape
    P = prep["w1"].shape[1]
    C4 = prep["w3"].shape[1]
    assert Cin == C4, "downsample=None bottleneck requires inplanes == planes*expansion"
    V = N * D * H * W
    x_vc = x_cl.reshape(V, Cin)
    h1 = pointwise_conv_bn_relu(x_vc, prep["w1"], prep["b1"], tv=tv)
    h1 = h1.reshape(N, D, H, W, P)
    return conv3x3x3_conv1x1_fused(h1, x_cl, prep["w2"], prep["b2"],
                                   prep["w3"], prep["b3"])


def bottleneck_forward(x_ncdhw, prep, *, compute_dtype=jnp.float32, tv=2048):
    """x: [N, Cin, D, H, W] (NCDHW), downsample=None (Cin == planes*4).

    The NCDHW<->NDHWC transposes are layout plumbing only; call
    bottleneck_forward_cl directly with channels-last data to avoid them.
    """
    x_cl = jnp.transpose(x_ncdhw, (0, 2, 3, 4, 1)).astype(compute_dtype)
    out = bottleneck_forward_cl(x_cl, prep, tv=tv)
    return jnp.transpose(out, (0, 4, 1, 2, 3))


# ---------------------------- reference (plain JAX) --------------------------

def bottleneck_reference(x, params):
    N, Cin, D, H, W = x.shape
    x_cl = jnp.transpose(x, (0, 2, 3, 4, 1))
    V = N * D * H * W
    x_vc = x_cl.reshape(V, Cin)
    P = params["w1"].shape[1]

    out = jnp.maximum(x_vc @ params["w1"] * params["s1"] + params["b1"], 0.0)
    out = out.reshape(N, D, H, W, P)
    xp = jnp.pad(out, ((0, 0), (1, 1), (1, 1), (1, 1), (0, 0)))
    acc = jnp.zeros((V, P), jnp.float32)
    t = 0
    for kd in range(3):
        for kh in range(3):
            for kw in range(3):
                acc = acc + xp[:, kd:kd + D, kh:kh + H, kw:kw + W, :].reshape(
                    V, P) @ params["w2"][t]
                t += 1
    out = jnp.maximum(acc * params["s2"] + params["b2"], 0.0)
    out = jnp.maximum(out @ params["w3"] * params["s3"] + params["b3"] + x_vc,
                      0.0)
    C4 = params["w3"].shape[1]
    return jnp.transpose(out.reshape(N, D, H, W, C4), (0, 4, 1, 2, 3))


# ------------------------------ main -----------------------------------------

if __name__ == "__main__":
    key = jax.random.PRNGKey(0)
    k_x, k_p = jax.random.split(key)

    N, inplanes, planes = 2, 16, 4            # expansion=4 -> out channels 16
    D = H = W = 8
    x = jax.random.normal(k_x, (N, inplanes, D, H, W), jnp.float32)
    params = init_bottleneck_params(k_p, inplanes, planes)
    ref = bottleneck_reference(x, params)

    # ---- f32 run (correctness) ----
    prep32 = prepare_params(params, jnp.float32)
    fwd32 = jax.jit(lambda xx: bottleneck_forward(
        xx, prep32, compute_dtype=jnp.float32, tv=512))
    out32 = jax.block_until_ready(fwd32(x))
    assert out32.shape == (N, planes * 4, D, H, W)
    assert jnp.allclose(out32, ref, atol=5e-4, rtol=5e-4), "f32 mismatch vs reference"

    # ---- bf16 run (v6e/v7x production setting: f32 MXU accumulation) ----
    prep16 = prepare_params(params, jnp.bfloat16)
    fwd16 = jax.jit(lambda xx: bottleneck_forward(
        xx, prep16, compute_dtype=jnp.bfloat16, tv=512))
    out16 = jax.block_until_ready(fwd16(x))
    err = float(jnp.max(jnp.abs(out16.astype(jnp.float32) - ref)))
    assert err < 0.25, f"bf16 mismatch vs reference: max abs err {err}"

    print("KERNEL_OK")
</pallas_src>

<mosaic_0001>
module attributes {stable_mosaic.version = 11 : i64} {
  func.func @_mm_bias_relu_kernel(%arg0: i32, %arg1: memref<512x16xf32, #tpu.memory_space<vmem>>, %arg2: memref<16x4xf32, #tpu.memory_space<vmem>>, %arg3: memref<1x4xf32, #tpu.memory_space<vmem>>, %arg4: memref<512x4xf32, #tpu.memory_space<vmem>>) attributes {dimension_semantics = [#tpu.dimension_semantics<parallel>], iteration_bounds = array<i64: 2>, scalar_prefetch = 0 : i64, scratch_operands = 0 : i64, tpu.core_type = #tpu.core_type<tc>, window_params = [{transform_indices = @transform_0, window_bounds = array<i64: 512, 16>}, {pipeline_mode = #tpu.pipeline_mode<synchronous>, transform_indices = @transform_1, window_bounds = array<i64: 16, 4>}, {pipeline_mode = #tpu.pipeline_mode<synchronous>, transform_indices = @transform_2, window_bounds = array<i64: 1, 4>}, {transform_indices = @transform_3, window_bounds = array<i64: 512, 4>}]} {
    %c0 = arith.constant 0 : index
    %c0_0 = arith.constant 0 : index
    %0 = vector.load %arg1[%c0, %c0_0] : memref<512x16xf32, #tpu.memory_space<vmem>>, vector<512x16xf32>
    %c0_1 = arith.constant 0 : index
    %c0_2 = arith.constant 0 : index
    %1 = vector.load %arg2[%c0_1, %c0_2] : memref<16x4xf32, #tpu.memory_space<vmem>>, vector<16x4xf32>
    %cst = arith.constant dense<0.000000e+00> : vector<512x4xf32>
    %2 = tpu.matmul %0, %1, %cst {dimension_numbers = #tpu.dot_dimension_numbers<[1], [0], [0], [1], [0, 0, 1, 1], [], []>} : vector<512x16xf32>, vector<16x4xf32>, vector<512x4xf32> -> vector<512x4xf32>
    %c0_3 = arith.constant 0 : index
    %c0_4 = arith.constant 0 : index
    %3 = vector.load %arg3[%c0_3, %c0_4] : memref<1x4xf32, #tpu.memory_space<vmem>>, vector<1x4xf32>
    %4 = vector.broadcast %3 : vector<1x4xf32> to vector<512x4xf32>
    %5 = arith.addf %2, %4 : vector<512x4xf32>
    %cst_5 = arith.constant 0.000000e+00 : f32
    %6 = vector.broadcast %cst_5 : f32 to vector<512x4xf32>
    %7 = arith.maximumf %5, %6 : vector<512x4xf32>
    %c0_6 = arith.constant 0 : index
    %c0_7 = arith.constant 0 : index
    %8 = vector.load %arg4[%c0_6, %c0_7] : memref<512x4xf32, #tpu.memory_space<vmem>>, vector<512x4xf32>
    tpu.vector_store %arg4[%c0_6, %c0_7], %7 {strides = array<i32>} : memref<512x4xf32, #tpu.memory_space<vmem>>, vector<512x4xf32>,
    return
  }
  func.func @transform_0(%arg0: i32) -> (i32, i32) {
    %c0_i32 = arith.constant 0 : i32
    %c0_i32_0 = arith.constant 0 : i32
    return %arg0, %c0_i32 : i32, i32
  }
  func.func @transform_1(%arg0: i32) -> (i32, i32) {
    %c0_i32 = arith.constant 0 : i32
    %c0_i32_0 = arith.constant 0 : i32
    %c0_i32_1 = arith.constant 0 : i32
    return %c0_i32, %c0_i32_0 : i32, i32
  }
  func.func @transform_2(%arg0: i32) -> (i32, i32) {
    %c0_i32 = arith.constant 0 : i32
    %c0_i32_0 = arith.constant 0 : i32
    %c0_i32_1 = arith.constant 0 : i32
    return %c0_i32, %c0_i32_0 : i32, i32
  }
  func.func @transform_3(%arg0: i32) -> (i32, i32) {
    %c0_i32 = arith.constant 0 : i32
    %c0_i32_0 = arith.constant 0 : i32
    return %arg0, %c0_i32 : i32, i32
  }
}

module attributes {stable_mosaic.version = 11 : i64} {
  func.func @_conv2_conv3_kernel(%arg0: i32, %arg1: i32, %arg2: i32, %arg3: memref<1x1x8x8x4xf32, #tpu.memory_space<vmem>>, %arg4: memref<27x4x4xf32, #tpu.memory_space<vmem>>, %arg5: memref<1x4xf32, #tpu.memory_space<vmem>>, %arg6: memref<4x16xf32, #tpu.memory_space<vmem>>, %arg7: memref<1x16xf32, #tpu.memory_space<vmem>>, %arg8: memref<1x1x64x16xf32, #tpu.memory_space<vmem>>, %arg9: memref<1x1x64x16xf32, #tpu.memory_space<vmem>>, %arg10: memref<10x10x4xf32, #tpu.memory_space<vmem>>, %arg11: memref<64x4xf32, #tpu.memory_space<vmem>>) attributes {dimension_semantics = [#tpu.dimension_semantics<parallel>, #tpu.dimension_semantics<parallel>, #tpu.dimension_semantics<arbitrary>], iteration_bounds = array<i64: 2, 8, 3>, scalar_prefetch = 0 : i64, scratch_operands = 2 : i64, tpu.core_type = #tpu.core_type<tc>, window_params = [{transform_indices = @transform_0, window_bounds = array<i64: 1, 1, 8, 8, 4>}, {pipeline_mode = #tpu.pipeline_mode<synchronous>, transform_indices = @transform_1, window_bounds = array<i64: 27, 4, 4>}, {pipeline_mode = #tpu.pipeline_mode<synchronous>, transform_indices = @transform_2, window_bounds = array<i64: 1, 4>}, {pipeline_mode = #tpu.pipeline_mode<synchronous>, transform_indices = @transform_3, window_bounds = array<i64: 4, 16>}, {pipeline_mode = #tpu.pipeline_mode<synchronous>, transform_indices = @transform_4, window_bounds = array<i64: 1, 16>}, {transform_indices = @transform_5, window_bounds = array<i64: 1, 1, 64, 16>}, {transform_indices = @transform_6, window_bounds = array<i64: 1, 1, 64, 16>}]} {
    %0 = arith.addi %arg1, %arg2 : i32
    %c1_i32 = arith.constant 1 : i32
    %1 = arith.subi %0, %c1_i32 : i32
    %c0_i32 = arith.constant 0 : i32
    %2 = arith.cmpi sge, %1, %c0_i32 : i32
    %c8_i32 = arith.constant 8 : i32
    %3 = arith.cmpi slt, %1, %c8_i32 : i32
    %4 = arith.andi %2, %3 : i1
    %c0_i32_0 = arith.constant 0 : i32
    %5 = arith.cmpi eq, %arg2, %c0_i32_0 : i32
    %6 = arith.extui %5 : i1 to i32
    %c0_i32_1 = arith.constant 0 : i32
    %7 = arith.cmpi ne, %6, %c0_i32_1 : i32
    scf.if %7 {
      %cst = arith.constant 0.000000e+00 : f32
      %17 = vector.broadcast %cst : f32 to vector<10x10x4xf32>
      %c0 = arith.constant 0 : index
      %c0_5 = arith.constant 0 : index
      %c0_6 = arith.constant 0 : index
      %18 = vector.load %arg10[%c0, %c0_5, %c0_6] : memref<10x10x4xf32, #tpu.memory_space<vmem>>, vector<10x10x4xf32>
      tpu.vector_store %arg10[%c0, %c0_5, %c0_6], %17 {strides = array<i32>} : memref<10x10x4xf32, #tpu.memory_space<vmem>>, vector<10x10x4xf32>,
    } else {
    }
    %true = arith.constant true
    %8 = arith.xori %4, %true : i1
    %9 = arith.andi %5, %8 : i1
    %10 = arith.extui %9 : i1 to i32
    %c0_i32_2 = arith.constant 0 : i32
    %11 = arith.cmpi ne, %10, %c0_i32_2 : i32
    scf.if %11 {
      %cst = arith.constant 0.000000e+00 : f32
      %17 = vector.broadcast %cst : f32 to vector<64x4xf32>
      %c0 = arith.constant 0 : index
      %c0_5 = arith.constant 0 : index
      %18 = vector.load %arg11[%c0, %c0_5] : memref<64x4xf32, #tpu.memory_space<vmem>>, vector<64x4xf32>
      tpu.vector_store %arg11[%c0, %c0_5], %17 {strides = array<i32>} : memref<64x4xf32, #tpu.memory_space<vmem>>, vector<64x4xf32>,
    } else {
    }
    %12 = arith.extui %4 : i1 to i32
    %c0_i32_3 = arith.constant 0 : i32
    %13 = arith.cmpi ne, %12, %c0_i32_3 : i32
    scf.if %13 {
      %c0 = arith.constant 0 : index
      %c0_5 = arith.constant 0 : index
      %c0_6 = arith.constant 0 : index
      %c0_7 = arith.constant 0 : index
      %c0_8 = arith.constant 0 : index
      %17 = vector.load %arg3[%c0, %c0_5, %c0_6, %c0_7, %c0_8] : memref<1x1x8x8x4xf32, #tpu.memory_space<vmem>>, vector<1x1x8x8x4xf32>
      %18 = vector.shape_cast %17 : vector<1x1x8x8x4xf32> to vector<8x8x4xf32>
      %c1 = arith.constant 1 : index
      %c1_9 = arith.constant 1 : index
      %c0_10 = arith.constant 0 : index
      %19 = vector.load %arg10[%c1, %c1_9, %c0_10] : memref<10x10x4xf32, #tpu.memory_space<vmem>>, vector<8x8x4xf32>
      tpu.vector_store %arg10[%c1, %c1_9, %c0_10], %18 {strides = array<i32>} : memref<10x10x4xf32, #tpu.memory_space<vmem>>, vector<8x8x4xf32>,
      %c0_11 = arith.constant 0 : index
      %c0_12 = arith.constant 0 : index
      %c0_13 = arith.constant 0 : index
      %20 = vector.load %arg10[%c0_11, %c0_12, %c0_13] : memref<10x10x4xf32, #tpu.memory_space<vmem>>, vector<8x8x4xf32>
      %21 = vector.shape_cast %20 : vector<8x8x4xf32> to vector<64x4xf32>
      %c9_i32 = arith.constant 9 : i32
      %22 = arith.muli %arg2, %c9_i32 : i32
      %c0_i32_14 = arith.constant 0 : i32
      %23 = arith.addi %22, %c0_i32_14 : i32
      %c0_i32_15 = arith.constant 0 : i32
      %24 = arith.addi %23, %c0_i32_15 : i32
      %25 = arith.index_cast %24 : i32 to index
      %c0_16 = arith.constant 0 : index
      %c0_17 = arith.constant 0 : index
      %26 = vector.load %arg4[%25, %c0_16, %c0_17] : memref<27x4x4xf32, #tpu.memory_space<vmem>>, vector<1x4x4xf32>
      %27 = vector.shape_cast %26 : vector<1x4x4xf32> to vector<4x4xf32>
      %cst = arith.constant dense<0.000000e+00> : vector<64x4xf32>
      %28 = tpu.matmul %21, %27, %cst {dimension_numbers = #tpu.dot_dimension_numbers<[1], [0], [0], [1], [0, 0, 1, 1], [], []>} : vector<64x4xf32>, vector<4x4xf32>, vector<64x4xf32> -> vector<64x4xf32>
      %c0_18 = arith.constant 0 : index
      %c1_19 = arith.constant 1 : index
      %c0_20 = arith.constant 0 : index
      %29 = vector.load %arg10[%c0_18, %c1_19, %c0_20] : memref<10x10x4xf32, #tpu.memory_space<vmem>>, vector<8x8x4xf32>
      %30 = vector.shape_cast %29 : vector<8x8x4xf32> to vector<64x4xf32>
      %c9_i32_21 = arith.constant 9 : i32
      %31 = arith.muli %arg2, %c9_i32_21 : i32
      %c0_i32_22 = arith.constant 0 : i32
      %32 = arith.addi %31, %c0_i32_22 : i32
      %c1_i32_23 = arith.constant 1 : i32
      %33 = arith.addi %32, %c1_i32_23 : i32
      %34 = arith.index_cast %33 : i32 to index
      %c0_24 = arith.constant 0 : index
      %c0_25 = arith.constant 0 : index
      %35 = vector.load %arg4[%34, %c0_24, %c0_25] : memref<27x4x4xf32, #tpu.memory_space<vmem>>, vector<1x4x4xf32>
      %36 = vector.shape_cast %35 : vector<1x4x4xf32> to vector<4x4xf32>
      %cst_26 = arith.constant dense<0.000000e+00> : vector<64x4xf32>
      %37 = tpu.matmul %30, %36, %cst_26 {dimension_numbers = #tpu.dot_dimension_numbers<[1], [0], [0], [1], [0, 0, 1, 1], [], []>} : vector<64x4xf32>, vector<4x4xf32>, vector<64x4xf32> -> vector<64x4xf32>
      %38 = arith.addf %28, %37 : vector<64x4xf32>
      %c0_27 = arith.constant 0 : index
      %c2 = arith.constant 2 : index
      %c0_28 = arith.constant 0 : index
      %39 = vector.load %arg10[%c0_27, %c2, %c0_28] : memref<10x10x4xf32, #tpu.memory_space<vmem>>, vector<8x8x4xf32>
      %40 = vector.shape_cast %39 : vector<8x8x4xf32> to vector<64x4xf32>
      %c9_i32_29 = arith.constant 9 : i32
      %41 = arith.muli %arg2, %c9_i32_29 : i32
      %c0_i32_30 = arith.constant 0 : i32
      %42 = arith.addi %41, %c0_i32_30 : i32
      %c2_i32_31 = arith.constant 2 : i32
      %43 = arith.addi %42, %c2_i32_31 : i32
      %44 = arith.index_cast %43 : i32 to index
      %c0_32 = arith.constant 0 : index
      %c0_33 = arith.constant 0 : index
      %45 = vector.load %arg4[%44, %c0_32, %c0_33] : memref<27x4x4xf32, #tpu.memory_space<vmem>>, vector<1x4x4xf32>
      %46 = vector.shape_cast %45 : vector<1x4x4xf32> to vector<4x4xf32>
      %cst_34 = arith.constant dense<0.000000e+00> : vector<64x4xf32>
      %47 = tpu.matmul %40, %46, %cst_34 {dimension_numbers = #tpu.dot_dimension_numbers<[1], [0], [0], [1], [0, 0, 1, 1], [], []>} : vector<64x4xf32>, vector<4x4xf32>, vector<64x4xf32> -> vector<64x4xf32>
      %48 = arith.addf %38, %47 : vector<64x4xf32>
      %c1_35 = arith.constant 1 : index
      %c0_36 = arith.constant 0 : index
      %c0_37 = arith.constant 0 : index
      %49 = vector.load %arg10[%c1_35, %c0_36, %c0_37] : memref<10x10x4xf32, #tpu.memory_space<vmem>>, vector<8x8x4xf32>
      %50 = vector.shape_cast %49 : vector<8x8x4xf32> to vector<64x4xf32>
      %c9_i32_38 = arith.constant 9 : i32
      %51 = arith.muli %arg2, %c9_i32_38 : i32
      %c3_i32 = arith.constant 3 : i32
      %52 = arith.addi %51, %c3_i32 : i32
      %c0_i32_39 = arith.constant 0 : i32
      %53 = arith.addi %52, %c0_i32_39 : i32
      %54 = arith.index_cast %53 : i32 to index
      %c0_40 = arith.constant 0 : index
      %c0_41 = arith.constant 0 : index
      %55 = vector.load %arg4[%54, %c0_40, %c0_41] : memref<27x4x4xf32, #tpu.memory_space<vmem>>, vector<1x4x4xf32>
      %56 = vector.shape_cast %55 : vector<1x4x4xf32> to vector<4x4xf32>
      %cst_42 = arith.constant dense<0.000000e+00> : vector<64x4xf32>
      %57 = tpu.matmul %50, %56, %cst_42 {dimension_numbers = #tpu.dot_dimension_numbers<[1], [0], [0], [1], [0, 0, 1, 1], [], []>} : vector<64x4xf32>, vector<4x4xf32>, vector<64x4xf32> -> vector<64x4xf32>
      %58 = arith.addf %48, %57 : vector<64x4xf32>
      %c1_43 = arith.constant 1 : index
      %c1_44 = arith.constant 1 : index
      %c0_45 = arith.constant 0 : index
      %59 = vector.load %arg10[%c1_43, %c1_44, %c0_45] : memref<10x10x4xf32, #tpu.memory_space<vmem>>, vector<8x8x4xf32>
      %60 = vector.shape_cast %59 : vector<8x8x4xf32> to vector<64x4xf32>
      %c9_i32_46 = arith.constant 9 : i32
      %61 = arith.muli %arg2, %c9_i32_46 : i32
      %c3_i32_47 = arith.constant 3 : i32
      %62 = arith.addi %61, %c3_i32_47 : i32
      %c1_i32_48 = arith.constant 1 : i32
      %63 = arith.addi %62, %c1_i32_48 : i32
      %64 = arith.index_cast %63 : i32 to index
      %c0_49 = arith.constant 0 : index
      %c0_50 = arith.constant 0 : index
      %65 = vector.load %arg4[%64, %c0_49, %c0_50] : memref<27x4x4xf32, #tpu.memory_space<vmem>>, vector<1x4x4xf32>
      %66 = vector.shape_cast %65 : vector<1x4x4xf32> to vector<4x4xf32>
      %cst_51 = arith.constant dense<0.000000e+00> : vector<64x4xf32>
      %67 = tpu.matmul %60, %66, %cst_51 {dimension_numbers = #tpu.dot_dimension_numbers<[1], [0], [0], [1], [0, 0, 1, 1], [], []>} : vector<64x4xf32>, vector<4x4xf32>, vector<64x4xf32> -> vector<64x4xf32>
      %68 = arith.addf %58, %67 : vector<64x4xf32>
      %c1_52 = arith.constant 1 : index
      %c2_53 = arith.constant 2 : index
      %c0_54 = arith.constant 0 : index
      %69 = vector.load %arg10[%c1_52, %c2_53, %c0_54] : memref<10x10x4xf32, #tpu.memory_space<vmem>>, vector<8x8x4xf32>
      %70 = vector.shape_cast %69 : vector<8x8x4xf32> to vector<64x4xf32>
      %c9_i32_55 = arith.constant 9 : i32
      %71 = arith.muli %arg2, %c9_i32_55 : i32
      %c3_i32_56 = arith.constant 3 : i32
      %72 = arith.addi %71, %c3_i32_56 : i32
      %c2_i32_57 = arith.constant 2 : i32
      %73 = arith.addi %72, %c2_i32_57 : i32
      %74 = arith.index_cast %73 : i32 to index
      %c0_58 = arith.constant 0 : index
      %c0_59 = arith.constant 0 : index
      %75 = vector.load %arg4[%74, %c0_58, %c0_59] : memref<27x4x4xf32, #tpu.memory_space<vmem>>, vector<1x4x4xf32>
      %76 = vector.shape_cast %75 : vector<1x4x4xf32> to vector<4x4xf32>
      %cst_60 = arith.constant dense<0.000000e+00> : vector<64x4xf32>
      %77 = tpu.matmul %70, %76, %cst_60 {dimension_numbers = #tpu.dot_dimension_numbers<[1], [0], [0], [1], [0, 0, 1, 1], [], []>} : vector<64x4xf32>, vector<4x4xf32>, vector<64x4xf32> -> vector<64x4xf32>
      %78 = arith.addf %68, %77 : vector<64x4xf32>
      %c2_61 = arith.constant 2 : index
      %c0_62 = arith.constant 0 : index
      %c0_63 = arith.constant 0 : index
      %79 = vector.load %arg10[%c2_61, %c0_62, %c0_63] : memref<10x10x4xf32, #tpu.memory_space<vmem>>, vector<8x8x4xf32>
      %80 = vector.shape_cast %79 : vector<8x8x4xf32> to vector<64x4xf32>
      %c9_i32_64 = arith.constant 9 : i32
      %81 = arith.muli %arg2, %c9_i32_64 : i32
      %c6_i32 = arith.constant 6 : i32
      %82 = arith.addi %81, %c6_i32 : i32
      %c0_i32_65 = arith.constant 0 : i32
      %83 = arith.addi %82, %c0_i32_65 : i32
      %84 = arith.index_cast %83 : i32 to index
      %c0_66 = arith.constant 0 : index
      %c0_67 = arith.constant 0 : index
      %85 = vector.load %arg4[%84, %c0_66, %c0_67] : memref<27x4x4xf32, #tpu.memory_space<vmem>>, vector<1x4x4xf32>
      %86 = vector.shape_cast %85 : vector<1x4x4xf32> to vector<4x4xf32>
      %cst_68 = arith.constant dense<0.000000e+00> : vector<64x4xf32>
      %87 = tpu.matmul %80, %86, %cst_68 {dimension_numbers = #tpu.dot_dimension_numbers<[1], [0], [0], [1], [0, 0, 1, 1], [], []>} : vector<64x4xf32>, vector<4x4xf32>, vector<64x4xf32> -> vector<64x4xf32>
      %88 = arith.addf %78, %87 : vector<64x4xf32>
      %c2_69 = arith.constant 2 : index
      %c1_70 = arith.constant 1 : index
      %c0_71 = arith.constant 0 : index
      %89 = vector.load %arg10[%c2_69, %c1_70, %c0_71] : memref<10x10x4xf32, #tpu.memory_space<vmem>>, vector<8x8x4xf32>
      %90 = vector.shape_cast %89 : vector<8x8x4xf32> to vector<64x4xf32>
      %c9_i32_72 = arith.constant 9 : i32
      %91 = arith.muli %arg2, %c9_i32_72 : i32
      %c6_i32_73 = arith.constant 6 : i32
      %92 = arith.addi %91, %c6_i32_73 : i32
      %c1_i32_74 = arith.constant 1 : i32
      %93 = arith.addi %92, %c1_i32_74 : i32
      %94 = arith.index_cast %93 : i32 to index
      %c0_75 = arith.constant 0 : index
      %c0_76 = arith.constant 0 : index
      %95 = vector.load %arg4[%94, %c0_75, %c0_76] : memref<27x4x4xf32, #tpu.memory_space<vmem>>, vector<1x4x4xf32>
      %96 = vector.shape_cast %95 : vector<1x4x4xf32> to vector<4x4xf32>
      %cst_77 = arith.constant dense<0.000000e+00> : vector<64x4xf32>
      %97 = tpu.matmul %90, %96, %cst_77 {dimension_numbers = #tpu.dot_dimension_numbers<[1], [0], [0], [1], [0, 0, 1, 1], [], []>} : vector<64x4xf32>, vector<4x4xf32>, vector<64x4xf32> -> vector<64x4xf32>
      %98 = arith.addf %88, %97 : vector<64x4xf32>
      %c2_78 = arith.constant 2 : index
      %c2_79 = arith.constant 2 : index
      %c0_80 = arith.constant 0 : index
      %99 = vector.load %arg10[%c2_78, %c2_79, %c0_80] : memref<10x10x4xf32, #tpu.memory_space<vmem>>, vector<8x8x4xf32>
      %100 = vector.shape_cast %99 : vector<8x8x4xf32> to vector<64x4xf32>
      %c9_i32_81 = arith.constant 9 : i32
      %101 = arith.muli %arg2, %c9_i32_81 : i32
      %c6_i32_82 = arith.constant 6 : i32
      %102 = arith.addi %101, %c6_i32_82 : i32
      %c2_i32_83 = arith.constant 2 : i32
      %103 = arith.addi %102, %c2_i32_83 : i32
      %104 = arith.index_cast %103 : i32 to index
      %c0_84 = arith.constant 0 : index
      %c0_85 = arith.constant 0 : index
      %105 = vector.load %arg4[%104, %c0_84, %c0_85] : memref<27x4x4xf32, #tpu.memory_space<vmem>>, vector<1x4x4xf32>
      %106 = vector.shape_cast %105 : vector<1x4x4xf32> to vector<4x4xf32>
      %cst_86 = arith.constant dense<0.000000e+00> : vector<64x4xf32>
      %107 = tpu.matmul %100, %106, %cst_86 {dimension_numbers = #tpu.dot_dimension_numbers<[1], [0], [0], [1], [0, 0, 1, 1], [], []>} : vector<64x4xf32>, vector<4x4xf32>, vector<64x4xf32> -> vector<64x4xf32>
      %108 = arith.addf %98, %107 : vector<64x4xf32>
      %109 = arith.extui %5 : i1 to i32
      %c0_i32_87 = arith.constant 0 : i32
      %110 = arith.cmpi ne, %109, %c0_i32_87 : i32
      scf.if %110 {
        %c0_90 = arith.constant 0 : index
        %c0_91 = arith.constant 0 : index
        %114 = vector.load %arg11[%c0_90, %c0_91] : memref<64x4xf32, #tpu.memory_space<vmem>>, vector<64x4xf32>
        tpu.vector_store %arg11[%c0_90, %c0_91], %108 {strides = array<i32>} : memref<64x4xf32, #tpu.memory_space<vmem>>, vector<64x4xf32>,
      } else {
      }
      %true_88 = arith.constant true
      %111 = arith.xori %5, %true_88 : i1
      %112 = arith.extui %111 : i1 to i32
      %c0_i32_89 = arith.constant 0 : i32
      %113 = arith.cmpi ne, %112, %c0_i32_89 : i32
      scf.if %113 {
        %c0_90 = arith.constant 0 : index
        %c0_91 = arith.constant 0 : index
        %114 = vector.load %arg11[%c0_90, %c0_91] : memref<64x4xf32, #tpu.memory_space<vmem>>, vector<64x4xf32>
        %115 = arith.addf %114, %108 : vector<64x4xf32>
        %c0_92 = arith.constant 0 : index
        %c0_93 = arith.constant 0 : index
        %116 = vector.load %arg11[%c0_92, %c0_93] : memref<64x4xf32, #tpu.memory_space<vmem>>, vector<64x4xf32>
        tpu.vector_store %arg11[%c0_92, %c0_93], %115 {strides = array<i32>} : memref<64x4xf32, #tpu.memory_space<vmem>>, vector<64x4xf32>,
      } else {
      }
    } else {
    }
    %c2_i32 = arith.constant 2 : i32
    %14 = arith.cmpi eq, %arg2, %c2_i32 : i32
    %15 = arith.extui %14 : i1 to i32
    %c0_i32_4 = arith.constant 0 : i32
    %16 = arith.cmpi ne, %15, %c0_i32_4 : i32
    scf.if %16 {
      %c0 = arith.constant 0 : index
      %c0_5 = arith.constant 0 : index
      %17 = vector.load %arg11[%c0, %c0_5] : memref<64x4xf32, #tpu.memory_space<vmem>>, vector<64x4xf32>
      %c0_6 = arith.constant 0 : index
      %c0_7 = arith.constant 0 : index
      %18 = vector.load %arg5[%c0_6, %c0_7] : memref<1x4xf32, #tpu.memory_space<vmem>>, vector<1x4xf32>
      %19 = vector.broadcast %18 : vector<1x4xf32> to vector<64x4xf32>
      %20 = arith.addf %17, %19 : vector<64x4xf32>
      %cst = arith.constant 0.000000e+00 : f32
      %21 = vector.broadcast %cst : f32 to vector<64x4xf32>
      %22 = arith.maximumf %20, %21 : vector<64x4xf32>
      %c0_8 = arith.constant 0 : index
      %c0_9 = arith.constant 0 : index
      %23 = vector.load %arg6[%c0_8, %c0_9] : memref<4x16xf32, #tpu.memory_space<vmem>>, vector<4x16xf32>
      %cst_10 = arith.constant dense<0.000000e+00> : vector<64x16xf32>
      %24 = tpu.matmul %22, %23, %cst_10 {dimension_numbers = #tpu.dot_dimension_numbers<[1], [0], [0], [1], [0, 0, 1, 1], [], []>} : vector<64x4xf32>, vector<4x16xf32>, vector<64x16xf32> -> vector<64x16xf32>
      %c0_11 = arith.constant 0 : index
      %c0_12 = arith.constant 0 : index
      %25 = vector.load %arg7[%c0_11, %c0_12] : memref<1x16xf32, #tpu.memory_space<vmem>>, vector<1x16xf32>
      %26 = vector.broadcast %25 : vector<1x16xf32> to vector<64x16xf32>
      %27 = arith.addf %24, %26 : vector<64x16xf32>
      %c0_13 = arith.constant 0 : index
      %c0_14 = arith.constant 0 : index
      %c0_15 = arith.constant 0 : index
      %c0_16 = arith.constant 0 : index
      %28 = vector.load %arg8[%c0_13, %c0_14, %c0_15, %c0_16] : memref<1x1x64x16xf32, #tpu.memory_space<vmem>>, vector<1x1x64x16xf32>
      %29 = vector.shape_cast %28 : vector<1x1x64x16xf32> to vector<64x16xf32>
      %30 = arith.addf %27, %29 : vector<64x16xf32>
      %cst_17 = arith.constant 0.000000e+00 : f32
      %31 = vector.broadcast %cst_17 : f32 to vector<64x16xf32>
      %32 = arith.maximumf %30, %31 : vector<64x16xf32>
      %c0_18 = arith.constant 0 : index
      %c0_19 = arith.constant 0 : index
      %c0_20 = arith.constant 0 : index
      %c0_21 = arith.constant 0 : index
      %33 = vector.load %arg9[%c0_18, %c0_19, %c0_20, %c0_21] : memref<1x1x64x16xf32, #tpu.memory_space<vmem>>, vector<1x1x64x16xf32>
      %34 = vector.shape_cast %33 : vector<1x1x64x16xf32> to vector<64x16xf32>
      %35 = vector.shape_cast %32 : vector<64x16xf32> to vector<1x1x64x16xf32>
      tpu.vector_store %arg9[%c0_18, %c0_19, %c0_20, %c0_21], %35 {strides = array<i32>} : memref<1x1x64x16xf32, #tpu.memory_space<vmem>>, vector<1x1x64x16xf32>,
    } else {
    }
    return
  }
  func.func @transform_0(%arg0: i32, %arg1: i32, %arg2: i32) -> (i32, i32, i32, i32, i32) {
    %0 = arith.addi %arg1, %arg2 : i32
    %c1_i32 = arith.constant 1 : i32
    %1 = arith.subi %0, %c1_i32 : i32
    %c0_i32 = arith.constant 0 : i32
    %2 = arith.maxsi %1, %c0_i32 : i32
    %c7_i32 = arith.constant 7 : i32
    %3 = arith.minsi %2, %c7_i32 : i32
    %c0_i32_0 = arith.constant 0 : i32
    %c0_i32_1 = arith.constant 0 : i32
    %c0_i32_2 = arith.constant 0 : i32
    %c0_i32_3 = arith.constant 0 : i32
    return %arg0, %3, %c0_i32_0, %c0_i32_1, %c0_i32_2 : i32, i32, i32, i32, i32
  }
  func.func @transform_1(%arg0: i32, %arg1: i32, %arg2: i32) -> (i32, i32, i32) {
    %c0_i32 = arith.constant 0 : i32
    %c0_i32_0 = arith.constant 0 : i32
    %c0_i32_1 = arith.constant 0 : i32
    %c0_i32_2 = arith.constant 0 : i32
    return %c0_i32, %c0_i32_0, %c0_i32_1 : i32, i32, i32
  }
  func.func @transform_2(%arg0: i32, %arg1: i32, %arg2: i32) -> (i32, i32) {
    %c0_i32 = arith.constant 0 : i32
    %c0_i32_0 = arith.constant 0 : i32
    %c0_i32_1 = arith.constant 0 : i32
    return %c0_i32, %c0_i32_0 : i32, i32
  }
  func.func @transform_3(%arg0: i32, %arg1: i32, %arg2: i32) -> (i32, i32) {
    %c0_i32 = arith.constant 0 : i32
    %c0_i32_0 = arith.constant 0 : i32
    %c0_i32_1 = arith.constant 0 : i32
    return %c0_i32, %c0_i32_0 : i32, i32
  }
  func.func @transform_4(%arg0: i32, %arg1: i32, %arg2: i32) -> (i32, i32) {
    %c0_i32 = arith.constant 0 : i32
    %c0_i32_0 = arith.constant 0 : i32
    %c0_i32_1 = arith.constant 0 : i32
    return %c0_i32, %c0_i32_0 : i32, i32
  }
  func.func @transform_5(%arg0: i32, %arg1: i32, %arg2: i32) -> (i32, i32, i32, i32) {
    %c0_i32 = arith.constant 0 : i32
    %c0_i32_0 = arith.constant 0 : i32
    %c0_i32_1 = arith.constant 0 : i32
    return %arg0, %arg1, %c0_i32, %c0_i32_0 : i32, i32, i32, i32
  }
  func.func @transform_6(%arg0: i32, %arg1: i32, %arg2: i32) -> (i32, i32, i32, i32) {
    %c0_i32 = arith.constant 0 : i32
    %c0_i32_0 = arith.constant 0 : i32
    %c0_i32_1 = arith.constant 0 : i32
    return %arg0, %arg1, %c0_i32, %c0_i32_0 : i32, i32, i32, i32
  }
}

</mosaic_0001>

<llo_original>
// kernel: _lambda_.2
$region0: #{_lambda_.2}
  #allocation0 [shape = 'u32[]', space=smem, size = 0x4, offset = 0x4, fixed_abs, tag = 'smem constant byte address 0x4 - core index']
  #allocation1 [shape = 'u32[72,128]{1,0:T(1,128)}', space=vmem, size = 0x9000, scoped, tag = 'internal scratch']
  %s0 = inlined_call_operand.hbm [shape: f32[1024,16], index: 0, kind: input, shape index: {}]
  %s1 = inlined_call_operand.hbm [shape: f32[16,4], index: 1, kind: input, shape index: {}]
  %s2 = inlined_call_operand.vmem [shape: f32[1,4], index: 2, kind: input, shape index: {}]
  %s3 = inlined_call_operand.vmem [shape: f32[1024,4], index: 3, kind: output, shape index: {}]
  %s4 = sld [smem:[#allocation0]]
  $region53: #{_lambda_.2} parent=0
    _
  %s6 = ssub.s32 1, %s4
  %s7 = scalar_select 0, %s6, %s4
  $region1: #{_lambda_.2} parent=0
    #allocation2 [shape = 'u8[524288]{0}', space=vmem, size = 0x80000, scoped, tag = 'input window, operand 0']
    #allocation3 [shape = 's32[2]{0}', space=sflag, size = 0x8, scoped, tag = 'scoped memory for _lambda_.2']
    #allocation4 [shape = 'u8[8192]{0}', space=vmem, size = 0x2000, scoped, tag = 'input window, operand 1, single buffered']
    #allocation5 [shape = 's32[1]{0}', space=sflag, size = 0x4, scoped, tag = 'scoped memory for _lambda_.2']
    %8 = vsyncpa [#allocation3], 0
    %s9 = scalar_lea.sflag [#allocation3], 1
    %10 = vsyncpa %s9, 0
    %11 = vsyncpa [#allocation5], 0
    loop: start=0, step=1, limit=4
    $region2: #{_lambda_.2} parent=1 // loop_pre_header
      _
    $region3: #{_lambda_.2} parent=1 // loop_header
      %s13 = sphi 0, %s17
      %p14 = scmp.ge.s32.totalorder %s13, 4
      %s23 = sphi 0, %s25
      %s26 = sphi 0, %s23
      %s27 = sphi 0, %s26
      %s43 = sphi 0, %s27
      %s47 = sphi 0, %s47
      %s49 = sphi 0, %s47
      %s50 = sphi 0, %s49
      %s64 = sphi 0, %s50
      %s68 = sphi 0, %s68
      %s70 = sphi 0, %s68
      %s71 = sphi 0, %s70
      %s85 = sphi 0, %s71
      %s91 = sphi 0, %s93
      %s94 = sphi 0, %s91
      %s95 = sphi 0, %s94
      %s111 = sphi 0, %s95
    $region4: #{_lambda_.2} parent=1 // loop_header_branch
      %16 = sbr.rel (%p14) target = $region8
    $region5: #{_lambda_.2} parent=1 // loop_body
      %s18 = ssub.s32 %s13, 1
      %s19 = ssub.s32 %s13, 2
      %s20 = sadd.s32 %s13, 1
      %s21 = ssub.s32 %s13, %s20
      %p22 = scmp.eq.s32.totalorder %s21, 0
      %s24 = sadd.s32 %s23, 1
      %s25 = scalar_select %p22, %s23, %s24
      %p28 = pneg %p22
      %p29 = scmp.eq.s32.totalorder %s13, 1
      %p30 = por %p28, %p29
      %p31 = scmp.ne.s32.totalorder %s23, %s26
      %p32 = scmp.eq.s32.totalorder %s13, 0
      %p33 = por %p31, %p32
      %p34 = scmp.ne.s32.totalorder %s23, %s26
      %p35 = scmp.eq.s32.totalorder %s18, 1
      %p36 = por %p34, %p35
      %p37 = scmp.ne.s32.totalorder %s26, %s27
      %p38 = scmp.eq.s32.totalorder %s18, 0
      %p39 = por %p37, %p38
      %p40 = scmp.ne.s32.totalorder %s26, %s27
      %p41 = scmp.eq.s32.totalorder %s19, 1
      %p42 = por %p40, %p41
      %p44 = scmp.ne.s32.totalorder %s27, %s43
      %p45 = scmp.eq.s32.totalorder %s19, 0
      %p46 = por %p44, %p45
      %s48 = sadd.s32 %s47, 1
      %p51 = scmp.eq.s32.totalorder %s13, 1
      %p52 = scmp.ne.s32.totalorder %s47, %s49
      %p53 = scmp.eq.s32.totalorder %s13, 0
      %p54 = por %p52, %p53
      %p55 = scmp.ne.s32.totalorder %s47, %s49
      %p56 = scmp.eq.s32.totalorder %s18, 1
      %p57 = por %p55, %p56
      %p58 = scmp.ne.s32.totalorder %s49, %s50
      %p59 = scmp.eq.s32.totalorder %s18, 0
      %p60 = por %p58, %p59
      %p61 = scmp.ne.s32.totalorder %s49, %s50
      %p62 = scmp.eq.s32.totalorder %s19, 1
      %p63 = por %p61, %p62
      %p65 = scmp.ne.s32.totalorder %s50, %s64
      %p66 = scmp.eq.s32.totalorder %s19, 0
      %p67 = por %p65, %p66
      %s69 = sadd.s32 %s68, 1
      %p72 = scmp.eq.s32.totalorder %s13, 1
      %p73 = scmp.ne.s32.totalorder %s68, %s70
      %p74 = scmp.eq.s32.totalorder %s13, 0
      %p75 = por %p73, %p74
      %p76 = scmp.ne.s32.totalorder %s68, %s70
      %p77 = scmp.eq.s32.totalorder %s18, 1
      %p78 = por %p76, %p77
      %p79 = scmp.ne.s32.totalorder %s70, %s71
      %p80 = scmp.eq.s32.totalorder %s18, 0
      %p81 = por %p79, %p80
      %p82 = scmp.ne.s32.totalorder %s70, %s71
      %p83 = scmp.eq.s32.totalorder %s19, 1
      %p84 = por %p82, %p83
      %p86 = scmp.ne.s32.totalorder %s71, %s85
      %p87 = scmp.eq.s32.totalorder %s19, 0
      %p88 = por %p86, %p87
      %s89 = ssub.s32 %s13, %s20
      %p90 = scmp.eq.s32.totalorder %s89, 0
      %s92 = sadd.s32 %s91, 1
      %s93 = scalar_select %p90, %s91, %s92
      %p96 = pneg %p90
      %p97 = scmp.eq.s32.totalorder %s13, 1
      %p98 = por %p96, %p97
      %p99 = scmp.ne.s32.totalorder %s91, %s94
      %p100 = scmp.eq.s32.totalorder %s13, 0
      %p101 = por %p99, %p100
      %p102 = scmp.ne.s32.totalorder %s91, %s94
      %p103 = scmp.eq.s32.totalorder %s18, 1
      %p104 = por %p102, %p103
      %p105 = scmp.ne.s32.totalorder %s94, %s95
      %p106 = scmp.eq.s32.totalorder %s18, 0
      %p107 = por %p105, %p106
      %p108 = scmp.ne.s32.totalorder %s94, %s95
      %p109 = scmp.eq.s32.totalorder %s19, 1
      %p110 = por %p108, %p109
      %p112 = scmp.ne.s32.totalorder %s95, %s111
      %p113 = scmp.eq.s32.totalorder %s19, 0
      %p114 = por %p112, %p113
      %p115 = scmp.le.s32.totalorder 1, %s13
      %p116 = scmp.lt.s32.totalorder %s13, 3
      %p117 = pnand %p115, %p116
      %p118 = pneg %p117
      // Predicated region
      $region9: #{_lambda_.2} parent=5 // pred_check
        _
      $region10: #{_lambda_.2} parent=5 // pred_check_branch
        %120 = sbr.rel (%p117) target = $region12
      $region11: #{_lambda_.2} parent=5 // pred_region
        %s121 = ssub.s32 %s13, 1
        // Predicated region
        $region13: #{_lambda_.2} parent=11 // pred_check
          %p122 = pneg %p60
        $region14: #{_lambda_.2} parent=11 // pred_check_branch
          %124 = sbr.rel (%p122) target = $region16
        $region15: #{_lambda_.2} parent=11 // pred_region
          %126 = vsyncadd [#allocation5], 0
          %s127 = sshll.u32 %s1, 4
          %s128 = int_to_ptr.hbm [resolvable:$true] %s127
          %s129 = sshll.u32 [#allocation4], 4
          %s130 = int_to_ptr.vmem [resolvable:$true] %s129
          %135 = dma.hbm_to_vmem [thread:$0]  %s128, 256, %s130, [#allocation5], 128, 128, 8
        $region16: #{_lambda_.2} parent=11 // pred_fallthru
          _
        // Predicated region
        $region17: #{_lambda_.2} parent=11 // pred_check
          %p136 = pneg %p81
        $region18: #{_lambda_.2} parent=11 // pred_check_branch
          %138 = sbr.rel (%p136) target = $region20
        $region19: #{_lambda_.2} parent=11 // pred_region
          _
        $region20: #{_lambda_.2} parent=11 // pred_fallthru
          _
      $region12: #{_lambda_.2} parent=5 // pred_fallthru
        _
      %p139 = scmp.lt.s32.totalorder %s13, 2
      // Predicated region
      $region21: #{_lambda_.2} parent=5 // pred_check
        %p140 = pneg %p139
      $region22: #{_lambda_.2} parent=5 // pred_check_branch
        %142 = sbr.rel (%p140) target = $region24
      $region23: #{_lambda_.2} parent=5 // pred_region
        // Predicated region
        $region25: #{_lambda_.2} parent=23 // pred_check
          %p143 = pneg %p33
        $region26: #{_lambda_.2} parent=23 // pred_check_branch
          %145 = sbr.rel (%p143) target = $region28
        $region27: #{_lambda_.2} parent=23 // pred_region
          %s146 = sand.u32 %s23, 1
          %s147 = scalar_lea.sflag [#allocation3], %s146
          %s148 = sand.u32 %s23, 1
          %s149 = smul.addr %s148, 512
          %s150 = scalar_lea.vmem [#allocation2], %s149
          %s151 = smul.u32 64, %s13
          %153 = vsyncadd %s147, 0
          %s154 = smul.addr %s151, 8
          %s155 = scalar_lea.hbm %s0, %s154
          %s156 = sshll.u32 %s155, 4
          %s157 = int_to_ptr.hbm [resolvable:$true] %s156
          %s158 = sshll.u32 %s150, 4
          %s159 = int_to_ptr.vmem [resolvable:$true] %s158
          %164 = dma.hbm_to_vmem [thread:$0]  %s157, 8192, %s159, %s147, 128, 128, 8
        $region28: #{_lambda_.2} parent=23 // pred_fallthru
          _
      $region24: #{_lambda_.2} parent=5 // pred_fallthru
        _
      %p165 = scmp.le.s32.totalorder 1, %s13
      %p166 = scmp.lt.s32.totalorder %s13, 3
      %p167 = pnand %p165, %p166
      %p168 = pneg %p167
      // Predicated region
      $region29: #{_lambda_.2} parent=5 // pred_check
        _
      $region30: #{_lambda_.2} parent=5 // pred_check_branch
        %170 = sbr.rel (%p167) target = $region32
      $region31: #{_lambda_.2} parent=5 // pred_region
        %s171 = ssub.s32 %s13, 1
        %s172 = sand.u32 %s26, 1
        %s173 = scalar_lea.sflag [#allocation3], %s172
        %s174 = sand.u32 %s26, 1
        %s175 = smul.addr %s174, 512
        %s176 = scalar_lea.vmem [#allocation2], %s175
        // Predicated region
        $region33: #{_lambda_.2} parent=31 // pred_check
          %p177 = pneg %p39
        $region34: #{_lambda_.2} parent=31 // pred_check_branch
          %179 = sbr.rel (%p177) target = $region36
        $region35: #{_lambda_.2} parent=31 // pred_region
          %181 = dma.done %s173, 8192
        $region36: #{_lambda_.2} parent=31 // pred_fallthru
          _
        // Predicated region
        $region37: #{_lambda_.2} parent=31 // pred_check
          %p182 = pneg %p60
        $region38: #{_lambda_.2} parent=31 // pred_check_branch
          %184 = sbr.rel (%p182) target = $region40
        $region39: #{_lambda_.2} parent=31 // pred_region
          %186 = dma.done [#allocation5], 256
        $region40: #{_lambda_.2} parent=31 // pred_fallthru
          _
        %s187 = sand.u32 %s26, 1
        %s188 = scalar_lea.sflag [#allocation3], %s187
        %s189 = sand.u32 %s26, 1
        %s190 = smul.addr %s189, 512
        %s191 = scalar_lea.vmem [#allocation2], %s190
        %p192 = pneg %p39
        %p193 = pneg %p36
        %p194 = pneg %p60
        %p195 = pneg %p57
        %p196 = pneg %p81
        %p197 = pneg %p78
        %p198 = pneg %p107
        %p199 = pneg %p104
        %s200 = smul.u32 64, %s18
        %p201 = scmp.lt.s32.totalorder %s200, 127
        %s202 = scalar_select %p201, %s200, 127
        %s203 = smul.addr %s202, 8
        %s204 = scalar_lea.vmem %s3, %s203
        %s205 = smul.u32 64, %s18
        %s206 = smul.u32 64, %s18
        %p207 = scmp.lt.s32.totalorder %s206, 127
        %s208 = scalar_select %p207, %s206, 127
        %s209 = smul.addr %s208, 8
        %s210 = scalar_lea.vmem %s3, %s209
        %s211 = smul.u32 64, %s18
        %v212 = vld [vmem:[%s176] sm:$0xff]
        %v213 = vld [vmem:[%s176 + $0x8] sm:$0xff]
        %v214 = vld [vmem:[%s176 + $0x10] sm:$0xff]
        %v215 = vld [vmem:[%s176 + $0x18] sm:$0xff]
        %v216 = vld [vmem:[%s176 + $0x20] sm:$0xff]
        %v217 = vld [vmem:[%s176 + $0x28] sm:$0xff]
        %v218 = vld [vmem:[%s176 + $0x30] sm:$0xff]
        %v219 = vld [vmem:[%s176 + $0x38] sm:$0xff]
        %v220 = vld [vmem:[%s176 + $0x40] sm:$0xff]
        %v221 = vld [vmem:[%s176 + $0x48] sm:$0xff]
        %v222 = vld [vmem:[%s176 + $0x50] sm:$0xff]
        %v223 = vld [vmem:[%s176 + $0x58] sm:$0xff]
        %v224 = vld [vmem:[%s176 + $0x60] sm:$0xff]
        %v225 = vld [vmem:[%s176 + $0x68] sm:$0xff]
        %v226 = vld [vmem:[%s176 + $0x70] sm:$0xff]
        %v227 = vld [vmem:[%s176 + $0x78] sm:$0xff]
        %v228 = vld [vmem:[%s176 + $0x80] sm:$0xff]
        %v229 = vld [vmem:[%s176 + $0x88] sm:$0xff]
        %v230 = vld [vmem:[%s176 + $0x90] sm:$0xff]
        %v231 = vld [vmem:[%s176 + $0x98] sm:$0xff]
        %v232 = vld [vmem:[%s176 + $0xa0] sm:$0xff]
        %v233 = vld [vmem:[%s176 + $0xa8] sm:$0xff]
        %v234 = vld [vmem:[%s176 + $0xb0] sm:$0xff]
        %v235 = vld [vmem:[%s176 + $0xb8] sm:$0xff]
        %v236 = vld [vmem:[%s176 + $0xc0] sm:$0xff]
        %v237 = vld [vmem:[%s176 + $0xc8] sm:$0xff]
        %v238 = vld [vmem:[%s176 + $0xd0] sm:$0xff]
        %v239 = vld [vmem:[%s176 + $0xd8] sm:$0xff]
        %v240 = vld [vmem:[%s176 + $0xe0] sm:$0xff]
        %v241 = vld [vmem:[%s176 + $0xe8] sm:$0xff]
        %v242 = vld [vmem:[%s176 + $0xf0] sm:$0xff]
        %v243 = vld [vmem:[%s176 + $0xf8] sm:$0xff]
        %v244 = vld [vmem:[%s176 + $0x100] sm:$0xff]
        %v245 = vld [vmem:[%s176 + $0x108] sm:$0xff]
        %v246 = vld [vmem:[%s176 + $0x110] sm:$0xff]
        %v247 = vld [vmem:[%s176 + $0x118] sm:$0xff]
        %v248 = vld [vmem:[%s176 + $0x120] sm:$0xff]
        %v249 = vld [vmem:[%s176 + $0x128] sm:$0xff]
        %v250 = vld [vmem:[%s176 + $0x130] sm:$0xff]
        %v251 = vld [vmem:[%s176 + $0x138] sm:$0xff]
        %v252 = vld [vmem:[%s176 + $0x140] sm:$0xff]
        %v253 = vld [vmem:[%s176 + $0x148] sm:$0xff]
        %v254 = vld [vmem:[%s176 + $0x150] sm:$0xff]
        %v255 = vld [vmem:[%s176 + $0x158] sm:$0xff]
        %v256 = vld [vmem:[%s176 + $0x160] sm:$0xff]
        %v257 = vld [vmem:[%s176 + $0x168] sm:$0xff]
        %v258 = vld [vmem:[%s176 + $0x170] sm:$0xff]
        %v259 = vld [vmem:[%s176 + $0x178] sm:$0xff]
        %v260 = vld [vmem:[%s176 + $0x180] sm:$0xff]
        %v261 = vld [vmem:[%s176 + $0x188] sm:$0xff]
        %v262 = vld [vmem:[%s176 + $0x190] sm:$0xff]
        %v263 = vld [vmem:[%s176 + $0x198] sm:$0xff]
        %v264 = vld [vmem:[%s176 + $0x1a0] sm:$0xff]
        %v265 = vld [vmem:[%s176 + $0x1a8] sm:$0xff]
        %v266 = vld [vmem:[%s176 + $0x1b0] sm:$0xff]
        %v267 = vld [vmem:[%s176 + $0x1b8] sm:$0xff]
        %v268 = vld [vmem:[%s176 + $0x1c0] sm:$0xff]
        %v269 = vld [vmem:[%s176 + $0x1c8] sm:$0xff]
        %v270 = vld [vmem:[%s176 + $0x1d0] sm:$0xff]
        %v271 = vld [vmem:[%s176 + $0x1d8] sm:$0xff]
        %v272 = vld [vmem:[%s176 + $0x1e0] sm:$0xff]
        %v273 = vld [vmem:[%s176 + $0x1e8] sm:$0xff]
        %v274 = vld [vmem:[%s176 + $0x1f0] sm:$0xff]
        %v275 = vld [vmem:[%s176 + $0x1f8] sm:$0xff]
        %v276 = vld [vmem:[#allocation4] sm:$0xff]
        %v277 = vld [vmem:[#allocation4 + $0x8] sm:$0xff]
        %v278 = vld [vmem:[%s2] sm:$0x1]
        %v280 = vperm.slane %v278, 0
        %vm282 = vcmask 130048
        %v284 = vsel %vm282, %v212, 0
        %v287 = vsel %vm282, %v213, 0
        %v290 = vsel %vm282, %v214, 0
        %v293 = vsel %vm282, %v215, 0
        %v296 = vsel %vm282, %v216, 0
        %v299 = vsel %vm282, %v217, 0
        %v302 = vsel %vm282, %v218, 0
        %v305 = vsel %vm282, %v219, 0
        %v308 = vsel %vm282, %v220, 0
        %v311 = vsel %vm282, %v221, 0
        %v314 = vsel %vm282, %v222, 0
        %v317 = vsel %vm282, %v223, 0
        %v320 = vsel %vm282, %v224, 0
        %v323 = vsel %vm282, %v225, 0
        %v326 = vsel %vm282, %v226, 0
        %v329 = vsel %vm282, %v227, 0
        %v332 = vsel %vm282, %v228, 0
        %v335 = vsel %vm282, %v229, 0
        %v338 = vsel %vm282, %v230, 0
        %v341 = vsel %vm282, %v231, 0
        %v344 = vsel %vm282, %v232, 0
        %v347 = vsel %vm282, %v233, 0
        %v350 = vsel %vm282, %v234, 0
        %v353 = vsel %vm282, %v235, 0
        %v356 = vsel %vm282, %v236, 0
        %v359 = vsel %vm282, %v237, 0
        %v362 = vsel %vm282, %v238, 0
        %v365 = vsel %vm282, %v239, 0
        %v368 = vsel %vm282, %v240, 0
        %v371 = vsel %vm282, %v241, 0
        %v374 = vsel %vm282, %v242, 0
        %v377 = vsel %vm282, %v243, 0
        %v380 = vsel %vm282, %v244, 0
        %v383 = vsel %vm282, %v245, 0
        %v386 = vsel %vm282, %v246, 0
        %v389 = vsel %vm282, %v247, 0
        %v392 = vsel %vm282, %v248, 0
        %v395 = vsel %vm282, %v249, 0
        %v398 = vsel %vm282, %v250, 0
        %v401 = vsel %vm282, %v251, 0
        %v404 = vsel %vm282, %v252, 0
        %v407 = vsel %vm282, %v253, 0
        %v410 = vsel %vm282, %v254, 0
        %v413 = vsel %vm282, %v255, 0
        %v416 = vsel %vm282, %v256, 0
        %v419 = vsel %vm282, %v257, 0
        %v422 = vsel %vm282, %v258, 0
        %v425 = vsel %vm282, %v259, 0
        %v428 = vsel %vm282, %v260, 0
        %v431 = vsel %vm282, %v261, 0
        %v434 = vsel %vm282, %v262, 0
        %v437 = vsel %vm282, %v263, 0
        %v440 = vsel %vm282, %v264, 0
        %v443 = vsel %vm282, %v265, 0
        %v446 = vsel %vm282, %v266, 0
        %v449 = vsel %vm282, %v267, 0
        %v452 = vsel %vm282, %v268, 0
        %v455 = vsel %vm282, %v269, 0
        %v458 = vsel %vm282, %v270, 0
        %v461 = vsel %vm282, %v271, 0
        %v464 = vsel %vm282, %v272, 0
        %v467 = vsel %vm282, %v273, 0
        %v470 = vsel %vm282, %v274, 0
        %v473 = vsel %vm282, %v275, 0
        %475 = vmatpush.msra.mxu0 0.0
        %476 = vmatpush.msra.mxu0 0.0
        %477 = vmatpush.msra.mxu0 0.0
        %478 = vmatpush.msra.mxu0 0.0
        %479 = vmatpush.msra.mxu0 0.0
        %480 = vmatpush.msra.mxu0 0.0
        %481 = vmatpush.msra.mxu0 0.0
        %482 = vmatpush.msra.mxu0 0.0
        %483 = vmatpush.msra.mxu0 0.0
        %484 = vmatpush.msra.mxu0 0.0
        %485 = vmatpush.msra.mxu0 0.0
        %486 = vmatpush.msra.mxu0 0.0
        %487 = vmatpush.msra.mxu0 0.0
        %488 = vmatpush.msra.mxu0 0.0
        %489 = vmatpush.msra.mxu0 %v277
        %490 = vmatpush.msra.mxu0 %v276
        %491 = vmatmul.f32.gmra.mxu0 %v284
        %v492 = vpop.f32.mrf.mxu0
        %v493 = vadd.f32 %v280, %v492
        %494 = vmatmul.f32.gmra.mxu0 %v287
        %v495 = vpop.f32.mrf.mxu0
        %v496 = vadd.f32 %v280, %v495
        %497 = vmatmul.f32.gmra.mxu0 %v290
        %v498 = vpop.f32.mrf.mxu0
        %v499 = vadd.f32 %v280, %v498
        %500 = vmatmul.f32.gmra.mxu0 %v293
        %v501 = vpop.f32.mrf.mxu0
        %v502 = vadd.f32 %v280, %v501
        %503 = vmatmul.f32.gmra.mxu0 %v296
        %v504 = vpop.f32.mrf.mxu0
        %v505 = vadd.f32 %v280, %v504
        %506 = vmatmul.f32.gmra.mxu0 %v299
        %v507 = vpop.f32.mrf.mxu0
        %v508 = vadd.f32 %v280, %v507
        %509 = vmatmul.f32.gmra.mxu0 %v302
        %v510 = vpop.f32.mrf.mxu0
        %v511 = vadd.f32 %v280, %v510
        %512 = vmatmul.f32.gmra.mxu0 %v305
        %v513 = vpop.f32.mrf.mxu0
        %v514 = vadd.f32 %v280, %v513
        %515 = vmatmul.f32.gmra.mxu0 %v308
        %v516 = vpop.f32.mrf.mxu0
        %v517 = vadd.f32 %v280, %v516
        %518 = vmatmul.f32.gmra.mxu0 %v311
        %v519 = vpop.f32.mrf.mxu0
        %v520 = vadd.f32 %v280, %v519
        %521 = vmatmul.f32.gmra.mxu0 %v314
        %v522 = vpop.f32.mrf.mxu0
        %v523 = vadd.f32 %v280, %v522
        %524 = vmatmul.f32.gmra.mxu0 %v317
        %v525 = vpop.f32.mrf.mxu0
        %v526 = vadd.f32 %v280, %v525
        %527 = vmatmul.f32.gmra.mxu0 %v320
        %v528 = vpop.f32.mrf.mxu0
        %v529 = vadd.f32 %v280, %v528
        %530 = vmatmul.f32.gmra.mxu0 %v323
        %v531 = vpop.f32.mrf.mxu0
        %v532 = vadd.f32 %v280, %v531
        %533 = vmatmul.f32.gmra.mxu0 %v326
        %v534 = vpop.f32.mrf.mxu0
        %v535 = vadd.f32 %v280, %v534
        %536 = vmatmul.f32.gmra.mxu0 %v329
        %v537 = vpop.f32.mrf.mxu0
        %v538 = vadd.f32 %v280, %v537
        %539 = vmatmul.f32.gmra.mxu0 %v332
        %v540 = vpop.f32.mrf.mxu0
        %v541 = vadd.f32 %v280, %v540
        %542 = vmatmul.f32.gmra.mxu0 %v335
        %v543 = vpop.f32.mrf.mxu0
        %v544 = vadd.f32 %v280, %v543
        %545 = vmatmul.f32.gmra.mxu0 %v338
        %v546 = vpop.f32.mrf.mxu0
        %v547 = vadd.f32 %v280, %v546
        %548 = vmatmul.f32.gmra.mxu0 %v341
        %v549 = vpop.f32.mrf.mxu0
        %v550 = vadd.f32 %v280, %v549
        %551 = vmatmul.f32.gmra.mxu0 %v344
        %v552 = vpop.f32.mrf.mxu0
        %v553 = vadd.f32 %v280, %v552
        %554 = vmatmul.f32.gmra.mxu0 %v347
        %v555 = vpop.f32.mrf.mxu0
        %v556 = vadd.f32 %v280, %v555
        %557 = vmatmul.f32.gmra.mxu0 %v350
        %v558 = vpop.f32.mrf.mxu0
        %v559 = vadd.f32 %v280, %v558
        %560 = vmatmul.f32.gmra.mxu0 %v353
        %v561 = vpop.f32.mrf.mxu0
        %v562 = vadd.f32 %v280, %v561
        %563 = vmatmul.f32.gmra.mxu0 %v356
        %v564 = vpop.f32.mrf.mxu0
        %v565 = vadd.f32 %v280, %v564
        %566 = vmatmul.f32.gmra.mxu0 %v359
        %v567 = vpop.f32.mrf.mxu0
        %v568 = vadd.f32 %v280, %v567
        %569 = vmatmul.f32.gmra.mxu0 %v362
        %v570 = vpop.f32.mrf.mxu0
        %v571 = vadd.f32 %v280, %v570
        %572 = vmatmul.f32.gmra.mxu0 %v365
        %v573 = vpop.f32.mrf.mxu0
        %v574 = vadd.f32 %v280, %v573
        %575 = vmatmul.f32.gmra.mxu0 %v368
        %v576 = vpop.f32.mrf.mxu0
        %v577 = vadd.f32 %v280, %v576
        %578 = vmatmul.f32.gmra.mxu0 %v371
        %v579 = vpop.f32.mrf.mxu0
        %v580 = vadd.f32 %v280, %v579
        %581 = vmatmul.f32.gmra.mxu0 %v374
        %v582 = vpop.f32.mrf.mxu0
        %v583 = vadd.f32 %v280, %v582
        %584 = vmatmul.f32.gmra.mxu0 %v377
        %v585 = vpop.f32.mrf.mxu0
        %v586 = vadd.f32 %v280, %v585
        %587 = vmatmul.f32.gmra.mxu0 %v380
        %v588 = vpop.f32.mrf.mxu0
        %v589 = vadd.f32 %v280, %v588
        %590 = vmatmul.f32.gmra.mxu0 %v383
        %v591 = vpop.f32.mrf.mxu0
        %v592 = vadd.f32 %v280, %v591
        %593 = vmatmul.f32.gmra.mxu0 %v386
        %v594 = vpop.f32.mrf.mxu0
        %v595 = vadd.f32 %v280, %v594
        %596 = vmatmul.f32.gmra.mxu0 %v389
        %v597 = vpop.f32.mrf.mxu0
        %v598 = vadd.f32 %v280, %v597
        %599 = vmatmul.f32.gmra.mxu0 %v392
        %v600 = vpop.f32.mrf.mxu0
        %v601 = vadd.f32 %v280, %v600
        %602 = vmatmul.f32.gmra.mxu0 %v395
        %v603 = vpop.f32.mrf.mxu0
        %v604 = vadd.f32 %v280, %v603
        %605 = vmatmul.f32.gmra.mxu0 %v398
        %v606 = vpop.f32.mrf.mxu0
        %v607 = vadd.f32 %v280, %v606
        %608 = vmatmul.f32.gmra.mxu0 %v401
        %v609 = vpop.f32.mrf.mxu0
        %v610 = vadd.f32 %v280, %v609
        %611 = vmatmul.f32.gmra.mxu0 %v404
        %v612 = vpop.f32.mrf.mxu0
        %v613 = vadd.f32 %v280, %v612
        %614 = vmatmul.f32.gmra.mxu0 %v407
        %v615 = vpop.f32.mrf.mxu0
        %v616 = vadd.f32 %v280, %v615
        %617 = vmatmul.f32.gmra.mxu0 %v410
        %v618 = vpop.f32.mrf.mxu0
        %v619 = vadd.f32 %v280, %v618
        %620 = vmatmul.f32.gmra.mxu0 %v413
        %v621 = vpop.f32.mrf.mxu0
        %v622 = vadd.f32 %v280, %v621
        %623 = vmatmul.f32.gmra.mxu0 %v416
        %v624 = vpop.f32.mrf.mxu0
        %v625 = vadd.f32 %v280, %v624
        %626 = vmatmul.f32.gmra.mxu0 %v419
        %v627 = vpop.f32.mrf.mxu0
        %v628 = vadd.f32 %v280, %v627
        %629 = vmatmul.f32.gmra.mxu0 %v422
        %v630 = vpop.f32.mrf.mxu0
        %v631 = vadd.f32 %v280, %v630
        %632 = vmatmul.f32.gmra.mxu0 %v425
        %v633 = vpop.f32.mrf.mxu0
        %v634 = vadd.f32 %v280, %v633
        %635 = vmatmul.f32.gmra.mxu0 %v428
        %v636 = vpop.f32.mrf.mxu0
        %v637 = vadd.f32 %v280, %v636
        %638 = vmatmul.f32.gmra.mxu0 %v431
        %v639 = vpop.f32.mrf.mxu0
        %v640 = vadd.f32 %v280, %v639
        %641 = vmatmul.f32.gmra.mxu0 %v434
        %v642 = vpop.f32.mrf.mxu0
        %v643 = vadd.f32 %v280, %v642
        %644 = vmatmul.f32.gmra.mxu0 %v437
        %v645 = vpop.f32.mrf.mxu0
        %v646 = vadd.f32 %v280, %v645
        %647 = vmatmul.f32.gmra.mxu0 %v440
        %v648 = vpop.f32.mrf.mxu0
        %v649 = vadd.f32 %v280, %v648
        %650 = vmatmul.f32.gmra.mxu0 %v443
        %v651 = vpop.f32.mrf.mxu0
        %v652 = vadd.f32 %v280, %v651
        %653 = vmatmul.f32.gmra.mxu0 %v446
        %v654 = vpop.f32.mrf.mxu0
        %v655 = vadd.f32 %v280, %v654
        %656 = vmatmul.f32.gmra.mxu0 %v449
        %v657 = vpop.f32.mrf.mxu0
        %v658 = vadd.f32 %v280, %v657
        %659 = vmatmul.f32.gmra.mxu0 %v452
        %v660 = vpop.f32.mrf.mxu0
        %v661 = vadd.f32 %v280, %v660
        %662 = vmatmul.f32.gmra.mxu0 %v455
        %v663 = vpop.f32.mrf.mxu0
        %v664 = vadd.f32 %v280, %v663
        %665 = vmatmul.f32.gmra.mxu0 %v458
        %v666 = vpop.f32.mrf.mxu0
        %v667 = vadd.f32 %v280, %v666
        %668 = vmatmul.f32.gmra.mxu0 %v461
        %v669 = vpop.f32.mrf.mxu0
        %v670 = vadd.f32 %v280, %v669
        %671 = vmatmul.f32.gmra.mxu0 %v464
        %v672 = vpop.f32.mrf.mxu0
        %v673 = vadd.f32 %v280, %v672
        %674 = vmatmul.f32.gmra.mxu0 %v467
        %v675 = vpop.f32.mrf.mxu0
        %v676 = vadd.f32 %v280, %v675
        %677 = vmatmul.f32.gmra.mxu0 %v470
        %v678 = vpop.f32.mrf.mxu0
        %v679 = vadd.f32 %v280, %v678
        %680 = vmatmul.f32.gmra.mxu0 %v473
        %v681 = vpop.f32.mrf.mxu0
        %v682 = vadd.f32 %v280, %v681
        %683 = vdwg.mxu0
        %v684 = vmax.f32 %v493, 0.0
        %v685 = vmax.f32 %v496, 0.0
        %v686 = vmax.f32 %v499, 0.0
        %v687 = vmax.f32 %v502, 0.0
        %v688 = vmax.f32 %v505, 0.0
        %v689 = vmax.f32 %v508, 0.0
        %v690 = vmax.f32 %v511, 0.0
        %v691 = vmax.f32 %v514, 0.0
        %v692 = vmax.f32 %v517, 0.0
        %v693 = vmax.f32 %v520, 0.0
        %v694 = vmax.f32 %v523, 0.0
        %v695 = vmax.f32 %v526, 0.0
        %v696 = vmax.f32 %v529, 0.0
        %v697 = vmax.f32 %v532, 0.0
        %v698 = vmax.f32 %v535, 0.0
        %v699 = vmax.f32 %v538, 0.0
        %v700 = vmax.f32 %v541, 0.0
        %v701 = vmax.f32 %v544, 0.0
        %v702 = vmax.f32 %v547, 0.0
        %v703 = vmax.f32 %v550, 0.0
        %v704 = vmax.f32 %v553, 0.0
        %v705 = vmax.f32 %v556, 0.0
        %v706 = vmax.f32 %v559, 0.0
        %v707 = vmax.f32 %v562, 0.0
        %v708 = vmax.f32 %v565, 0.0
        %v709 = vmax.f32 %v568, 0.0
        %v710 = vmax.f32 %v571, 0.0
        %v711 = vmax.f32 %v574, 0.0
        %v712 = vmax.f32 %v577, 0.0
        %v713 = vmax.f32 %v580, 0.0
        %v714 = vmax.f32 %v583, 0.0
        %v715 = vmax.f32 %v586, 0.0
        %v716 = vmax.f32 %v589, 0.0
        %v717 = vmax.f32 %v592, 0.0
        %v718 = vmax.f32 %v595, 0.0
        %v719 = vmax.f32 %v598, 0.0
        %v720 = vmax.f32 %v601, 0.0
        %v721 = vmax.f32 %v604, 0.0
        %v722 = vmax.f32 %v607, 0.0
        %v723 = vmax.f32 %v610, 0.0
        %v724 = vmax.f32 %v613, 0.0
        %v725 = vmax.f32 %v616, 0.0
        %v726 = vmax.f32 %v619, 0.0
        %v727 = vmax.f32 %v622, 0.0
        %v728 = vmax.f32 %v625, 0.0
        %v729 = vmax.f32 %v628, 0.0
        %v730 = vmax.f32 %v631, 0.0
        %v731 = vmax.f32 %v634, 0.0
        %v732 = vmax.f32 %v637, 0.0
        %v733 = vmax.f32 %v640, 0.0
        %v734 = vmax.f32 %v643, 0.0
        %v735 = vmax.f32 %v646, 0.0
        %v736 = vmax.f32 %v649, 0.0
        %v737 = vmax.f32 %v652, 0.0
        %v738 = vmax.f32 %v655, 0.0
        %v739 = vmax.f32 %v658, 0.0
        %v740 = vmax.f32 %v661, 0.0
        %v741 = vmax.f32 %v664, 0.0
        %v742 = vmax.f32 %v667, 0.0
        %v743 = vmax.f32 %v670, 0.0
        %v744 = vmax.f32 %v673, 0.0
        %v745 = vmax.f32 %v676, 0.0
        %v746 = vmax.f32 %v679, 0.0
        %v747 = vmax.f32 %v682, 0.0
        %vm748 = vcmask 31744
        %749 = vst.msk [vmem:[%s210] sm:$0xff] %vm748, %v684
        %750 = vst.msk [vmem:[%s210 + $0x8] sm:$0xff] %vm748, %v685
        %751 = vst.msk [vmem:[%s210 + $0x10] sm:$0xff] %vm748, %v686
        %752 = vst.msk [vmem:[%s210 + $0x18] sm:$0xff] %vm748, %v687
        %753 = vst.msk [vmem:[%s210 + $0x20] sm:$0xff] %vm748, %v688
        %754 = vst.msk [vmem:[%s210 + $0x28] sm:$0xff] %vm748, %v689
        %755 = vst.msk [vmem:[%s210 + $0x30] sm:$0xff] %vm748, %v690
        %756 = vst.msk [vmem:[%s210 + $0x38] sm:$0xff] %vm748, %v691
        %757 = vst.msk [vmem:[%s210 + $0x40] sm:$0xff] %vm748, %v692
        %758 = vst.msk [vmem:[%s210 + $0x48] sm:$0xff] %vm748, %v693
        %759 = vst.msk [vmem:[%s210 + $0x50] sm:$0xff] %vm748, %v694
        %760 = vst.msk [vmem:[%s210 + $0x58] sm:$0xff] %vm748, %v695
        %761 = vst.msk [vmem:[%s210 + $0x60] sm:$0xff] %vm748, %v696
        %762 = vst.msk [vmem:[%s210 + $0x68] sm:$0xff] %vm748, %v697
        %763 = vst.msk [vmem:[%s210 + $0x70] sm:$0xff] %vm748, %v698
        %764 = vst.msk [vmem:[%s210 + $0x78] sm:$0xff] %vm748, %v699
        %765 = vst.msk [vmem:[%s210 + $0x80] sm:$0xff] %vm748, %v700
        %766 = vst.msk [vmem:[%s210 + $0x88] sm:$0xff] %vm748, %v701
        %767 = vst.msk [vmem:[%s210 + $0x90] sm:$0xff] %vm748, %v702
        %768 = vst.msk [vmem:[%s210 + $0x98] sm:$0xff] %vm748, %v703
        %769 = vst.msk [vmem:[%s210 + $0xa0] sm:$0xff] %vm748, %v704
        %770 = vst.msk [vmem:[%s210 + $0xa8] sm:$0xff] %vm748, %v705
        %771 = vst.msk [vmem:[%s210 + $0xb0] sm:$0xff] %vm748, %v706
        %772 = vst.msk [vmem:[%s210 + $0xb8] sm:$0xff] %vm748, %v707
        %773 = vst.msk [vmem:[%s210 + $0xc0] sm:$0xff] %vm748, %v708
        %774 = vst.msk [vmem:[%s210 + $0xc8] sm:$0xff] %vm748, %v709
        %775 = vst.msk [vmem:[%s210 + $0xd0] sm:$0xff] %vm748, %v710
        %776 = vst.msk [vmem:[%s210 + $0xd8] sm:$0xff] %vm748, %v711
        %777 = vst.msk [vmem:[%s210 + $0xe0] sm:$0xff] %vm748, %v712
        %778 = vst.msk [vmem:[%s210 + $0xe8] sm:$0xff] %vm748, %v713
        %779 = vst.msk [vmem:[%s210 + $0xf0] sm:$0xff] %vm748, %v714
        %780 = vst.msk [vmem:[%s210 + $0xf8] sm:$0xff] %vm748, %v715
        %781 = vst.msk [vmem:[%s210 + $0x100] sm:$0xff] %vm748, %v716
        %782 = vst.msk [vmem:[%s210 + $0x108] sm:$0xff] %vm748, %v717
        %783 = vst.msk [vmem:[%s210 + $0x110] sm:$0xff] %vm748, %v718
        %784 = vst.msk [vmem:[%s210 + $0x118] sm:$0xff] %vm748, %v719
        %785 = vst.msk [vmem:[%s210 + $0x120] sm:$0xff] %vm748, %v720
        %786 = vst.msk [vmem:[%s210 + $0x128] sm:$0xff] %vm748, %v721
        %787 = vst.msk [vmem:[%s210 + $0x130] sm:$0xff] %vm748, %v722
        %788 = vst.msk [vmem:[%s210 + $0x138] sm:$0xff] %vm748, %v723
        %789 = vst.msk [vmem:[%s210 + $0x140] sm:$0xff] %vm748, %v724
        %790 = vst.msk [vmem:[%s210 + $0x148] sm:$0xff] %vm748, %v725
        %791 = vst.msk [vmem:[%s210 + $0x150] sm:$0xff] %vm748, %v726
        %792 = vst.msk [vmem:[%s210 + $0x158] sm:$0xff] %vm748, %v727
        %793 = vst.msk [vmem:[%s210 + $0x160] sm:$0xff] %vm748, %v728
        %794 = vst.msk [vmem:[%s210 + $0x168] sm:$0xff] %vm748, %v729
        %795 = vst.msk [vmem:[%s210 + $0x170] sm:$0xff] %vm748, %v730
        %796 = vst.msk [vmem:[%s210 + $0x178] sm:$0xff] %vm748, %v731
        %797 = vst.msk [vmem:[%s210 + $0x180] sm:$0xff] %vm748, %v732
        %798 = vst.msk [vmem:[%s210 + $0x188] sm:$0xff] %vm748, %v733
        %799 = vst.msk [vmem:[%s210 + $0x190] sm:$0xff] %vm748, %v734
        %800 = vst.msk [vmem:[%s210 + $0x198] sm:$0xff] %vm748, %v735
        %801 = vst.msk [vmem:[%s210 + $0x1a0] sm:$0xff] %vm748, %v736
        %802 = vst.msk [vmem:[%s210 + $0x1a8] sm:$0xff] %vm748, %v737
        %803 = vst.msk [vmem:[%s210 + $0x1b0] sm:$0xff] %vm748, %v738
        %804 = vst.msk [vmem:[%s210 + $0x1b8] sm:$0xff] %vm748, %v739
        %805 = vst.msk [vmem:[%s210 + $0x1c0] sm:$0xff] %vm748, %v740
        %806 = vst.msk [vmem:[%s210 + $0x1c8] sm:$0xff] %vm748, %v741
        %807 = vst.msk [vmem:[%s210 + $0x1d0] sm:$0xff] %vm748, %v742
        %808 = vst.msk [vmem:[%s210 + $0x1d8] sm:$0xff] %vm748, %v743
        %809 = vst.msk [vmem:[%s210 + $0x1e0] sm:$0xff] %vm748, %v744
        %810 = vst.msk [vmem:[%s210 + $0x1e8] sm:$0xff] %vm748, %v745
        %811 = vst.msk [vmem:[%s210 + $0x1f0] sm:$0xff] %vm748, %v746
        %812 = vst.msk [vmem:[%s210 + $0x1f8] sm:$0xff] %vm748, %v747
        %s813 = smul.u32 64, %s18
        %p814 = scmp.lt.s32.totalorder %s813, 127
        %s815 = scalar_select %p814, %s813, 127
        %s816 = smul.addr %s815, 8
        %s817 = scalar_lea.vmem %s3, %s816
        // Predicated region
        $region41: #{_lambda_.2} parent=31 // pred_check
          %p818 = pneg %p104
        $region42: #{_lambda_.2} parent=31 // pred_check_branch
          %820 = sbr.rel (%p818) target = $region44
        $region43: #{_lambda_.2} parent=31 // pred_region
          %s821 = smul.u32 64, %s18
        $region44: #{_lambda_.2} parent=31 // pred_fallthru
          _
      $region32: #{_lambda_.2} parent=5 // pred_fallthru
        _
      %p822 = scmp.le.s32.totalorder 2, %s13
      // Predicated region
      $region45: #{_lambda_.2} parent=5 // pred_check
        %p823 = pneg %p822
      $region46: #{_lambda_.2} parent=5 // pred_check_branch
        %825 = sbr.rel (%p823) target = $region48
      $region47: #{_lambda_.2} parent=5 // pred_region
        %s826 = ssub.s32 %s13, 2
        // Predicated region
        $region49: #{_lambda_.2} parent=47 // pred_check
          %p827 = pneg %p110
        $region50: #{_lambda_.2} parent=47 // pred_check_branch
          %829 = sbr.rel (%p827) target = $region52
        $region51: #{_lambda_.2} parent=47 // pred_region
          %s830 = smul.u32 64, %s19
          %p831 = scmp.lt.s32.totalorder %s830, 127
          %s832 = scalar_select %p831, %s830, 127
          %s833 = smul.addr %s832, 8
          %s834 = scalar_lea.vmem %s3, %s833
        $region52: #{_lambda_.2} parent=47 // pred_fallthru
          _
      $region48: #{_lambda_.2} parent=5 // pred_fallthru
        _
    $region6: #{_lambda_.2} parent=1 // loop_footer
      %s17 = sadd.s32 1, %s13
    $region7: #{_lambda_.2} parent=1 // loop_footer_branch
      %12 = sbr.rel target = $region3
    $region8: #{_lambda_.2} parent=1 // loop_exit
      _
    %835 = vsyncpa [#allocation3], 1
    %s836 = scalar_lea.sflag [#allocation3], 1
    %837 = vsyncpa %s836, 1
    %838 = vsyncpa [#allocation5], 1

// kernel: _lambda_.3
$region0: #{_lambda_.3}
  #allocation0 [shape = 'u32[]', space=smem, size = 0x4, offset = 0x4, fixed_abs, tag = 'smem constant byte address 0x4 - core index']
  #allocation1 [shape = 'u32[72,128]{1,0:T(1,128)}', space=vmem, size = 0x9000, scoped, tag = 'internal scratch']
  #allocation2 [shape = 'f32[10,10,4]{2,1,0:T(8,128)}', space=vmem, size = 0x14000, scoped, tag = 'scratch operand']
  #allocation3 [shape = 'f32[64,4]{1,0:T(8,128)}', space=vmem, size = 0x8000, scoped, tag = 'scratch operand']
  %s0 = inlined_call_operand.vmem [shape: f32[2,8,8,8,4], index: 0, kind: input, shape index: {}]
  %s1 = inlined_call_operand.vmem [shape: f32[27,4,4], index: 1, kind: input, shape index: {}]
  %s2 = inlined_call_operand.vmem [shape: f32[1,4], index: 2, kind: input, shape index: {}]
  %s3 = inlined_call_operand.vmem [shape: f32[4,16], index: 3, kind: input, shape index: {}]
  %s4 = inlined_call_operand.vmem [shape: f32[1,16], index: 4, kind: input, shape index: {}]
  %s5 = inlined_call_operand.hbm [shape: f32[2,8,64,16], index: 5, kind: input, shape index: {}]
  %s6 = inlined_call_operand.hbm [shape: f32[2,8,64,16], index: 6, kind: output, shape index: {}]
  %s7 = sld [smem:[#allocation0]]
  $region85: #{_lambda_.3} parent=0
    _
  %s9 = ssub.s32 1, %s7
  %s10 = scalar_select 0, %s9, %s7
  $region1: #{_lambda_.3} parent=0
    #allocation4 [shape = 'u8[65536]{0}', space=vmem, size = 0x10000, scoped, tag = 'input window, operand 5']
    #allocation5 [shape = 's32[2]{0}', space=sflag, size = 0x8, scoped, tag = 'scoped memory for _lambda_.3']
    #allocation6 [shape = 's32[2]{0}', space=sflag, size = 0x8, scoped, tag = 'scoped memory for _lambda_.3']
    #allocation7 [shape = 'u8[65536]{0}', space=vmem, size = 0x10000, scoped, tag = 'output window, operand 0']
    %11 = vsyncpa [#allocation5], 0
    %s12 = scalar_lea.sflag [#allocation5], 1
    %13 = vsyncpa %s12, 0
    %14 = vsyncpa [#allocation6], 0
    %s15 = scalar_lea.sflag [#allocation6], 1
    %16 = vsyncpa %s15, 0
    loop: start=0, step=1, limit=50
    $region2: #{_lambda_.3} parent=1 // loop_pre_header
      _
    $region3: #{_lambda_.3} parent=1 // loop_header
      %s18 = sphi 0, %s22
      %p19 = scmp.ge.s32.totalorder %s18, 50
      %s25 = sphi 0, %s44
      %s26 = sphi 0, %s40
      %s27 = sphi 0, %s36
      %s28 = sphi 0, %s25
      %s29 = sphi 0, %s26
      %s30 = sphi 0, %s27
      %s31 = sphi 0, %s28
      %s32 = sphi 0, %s29
      %s33 = sphi 0, %s30
      %s61 = sphi 0, %s63
      %s64 = sphi 0, %s61
      %s65 = sphi 0, %s64
      %s81 = sphi 0, %s65
      %s85 = sphi 0, %s85
      %s87 = sphi 0, %s85
      %s88 = sphi 0, %s87
      %s102 = sphi 0, %s88
      %s106 = sphi 0, %s106
      %s108 = sphi 0, %s106
      %s109 = sphi 0, %s108
      %s123 = sphi 0, %s109
      %s127 = sphi 0, %s127
      %s129 = sphi 0, %s127
      %s130 = sphi 0, %s129
      %s144 = sphi 0, %s130
      %s148 = sphi 0, %s148
      %s150 = sphi 0, %s148
      %s151 = sphi 0, %s150
      %s165 = sphi 0, %s151
      %s173 = sphi 0, %s175
      %s176 = sphi 0, %s173
      %s177 = sphi 0, %s176
      %s193 = sphi 0, %s177
      %s201 = sphi 0, %s203
      %s204 = sphi 0, %s201
      %s205 = sphi 0, %s204
      %s221 = sphi 0, %s205
    $region4: #{_lambda_.3} parent=1 // loop_header_branch
      %21 = sbr.rel (%p19) target = $region8
    $region5: #{_lambda_.3} parent=1 // loop_body
      %s23 = ssub.s32 %s18, 1
      %s24 = ssub.s32 %s18, 2
      %s34 = sadd.s32 1, %s27
      %p35 = scmp.ge.s32.totalorder %s34, 3
      %s36 = scalar_select %p35, 0, %s34
      %s37 = sadd.s32 1, %s26
      %s38 = scalar_select %p35, %s37, %s26
      %p39 = scmp.ge.s32.totalorder %s38, 8
      %s40 = scalar_select %p39, 0, %s38
      %s41 = sadd.s32 1, %s25
      %s42 = scalar_select %p39, %s41, %s25
      %p43 = scmp.ge.s32.totalorder %s42, 2
      %s44 = scalar_select %p43, 0, %s42
      %s45 = sadd.s32 %s26, %s27
      %s46 = ssub.s32 %s45, 1
      %p47 = scmp.gt.s32.totalorder %s46, 0
      %s48 = scalar_select %p47, %s46, 0
      %p49 = scmp.lt.s32.totalorder %s48, 7
      %s50 = scalar_select %p49, %s48, 7
      %s51 = sadd.s32 %s40, %s36
      %s52 = ssub.s32 %s51, 1
      %p53 = scmp.gt.s32.totalorder %s52, 0
      %s54 = scalar_select %p53, %s52, 0
      %p55 = scmp.lt.s32.totalorder %s54, 7
      %s56 = scalar_select %p55, %s54, 7
      %s57 = ssub.s32 %s25, %s44
      %s58 = ssub.s32 %s50, %s56
      %s59 = sor.u32 %s57, %s58
      %p60 = scmp.eq.s32.totalorder %s59, 0
      %s62 = sadd.s32 %s61, 1
      %s63 = scalar_select %p60, %s61, %s62
      %p66 = pneg %p60
      %p67 = scmp.eq.s32.totalorder %s18, 47
      %p68 = por %p66, %p67
      %p69 = scmp.ne.s32.totalorder %s61, %s64
      %p70 = scmp.eq.s32.totalorder %s18, 0
      %p71 = por %p69, %p70
      %p72 = scmp.ne.s32.totalorder %s61, %s64
      %p73 = scmp.eq.s32.totalorder %s23, 47
      %p74 = por %p72, %p73
      %p75 = scmp.ne.s32.totalorder %s64, %s65
      %p76 = scmp.eq.s32.totalorder %s23, 0
      %p77 = por %p75, %p76
      %p78 = scmp.ne.s32.totalorder %s64, %s65
      %p79 = scmp.eq.s32.totalorder %s24, 47
      %p80 = por %p78, %p79
      %p82 = scmp.ne.s32.totalorder %s65, %s81
      %p83 = scmp.eq.s32.totalorder %s24, 0
      %p84 = por %p82, %p83
      %s86 = sadd.s32 %s85, 1
      %p89 = scmp.eq.s32.totalorder %s18, 47
      %p90 = scmp.ne.s32.totalorder %s85, %s87
      %p91 = scmp.eq.s32.totalorder %s18, 0
      %p92 = por %p90, %p91
      %p93 = scmp.ne.s32.totalorder %s85, %s87
      %p94 = scmp.eq.s32.totalorder %s23, 47
      %p95 = por %p93, %p94
      %p96 = scmp.ne.s32.totalorder %s87, %s88
      %p97 = scmp.eq.s32.totalorder %s23, 0
      %p98 = por %p96, %p97
      %p99 = scmp.ne.s32.totalorder %s87, %s88
      %p100 = scmp.eq.s32.totalorder %s24, 47
      %p101 = por %p99, %p100
      %p103 = scmp.ne.s32.totalorder %s88, %s102
      %p104 = scmp.eq.s32.totalorder %s24, 0
      %p105 = por %p103, %p104
      %s107 = sadd.s32 %s106, 1
      %p110 = scmp.eq.s32.totalorder %s18, 47
      %p111 = scmp.ne.s32.totalorder %s106, %s108
      %p112 = scmp.eq.s32.totalorder %s18, 0
      %p113 = por %p111, %p112
      %p114 = scmp.ne.s32.totalorder %s106, %s108
      %p115 = scmp.eq.s32.totalorder %s23, 47
      %p116 = por %p114, %p115
      %p117 = scmp.ne.s32.totalorder %s108, %s109
      %p118 = scmp.eq.s32.totalorder %s23, 0
      %p119 = por %p117, %p118
      %p120 = scmp.ne.s32.totalorder %s108, %s109
      %p121 = scmp.eq.s32.totalorder %s24, 47
      %p122 = por %p120, %p121
      %p124 = scmp.ne.s32.totalorder %s109, %s123
      %p125 = scmp.eq.s32.totalorder %s24, 0
      %p126 = por %p124, %p125
      %s128 = sadd.s32 %s127, 1
      %p131 = scmp.eq.s32.totalorder %s18, 47
      %p132 = scmp.ne.s32.totalorder %s127, %s129
      %p133 = scmp.eq.s32.totalorder %s18, 0
      %p134 = por %p132, %p133
      %p135 = scmp.ne.s32.totalorder %s127, %s129
      %p136 = scmp.eq.s32.totalorder %s23, 47
      %p137 = por %p135, %p136
      %p138 = scmp.ne.s32.totalorder %s129, %s130
      %p139 = scmp.eq.s32.totalorder %s23, 0
      %p140 = por %p138, %p139
      %p141 = scmp.ne.s32.totalorder %s129, %s130
      %p142 = scmp.eq.s32.totalorder %s24, 47
      %p143 = por %p141, %p142
      %p145 = scmp.ne.s32.totalorder %s130, %s144
      %p146 = scmp.eq.s32.totalorder %s24, 0
      %p147 = por %p145, %p146
      %s149 = sadd.s32 %s148, 1
      %p152 = scmp.eq.s32.totalorder %s18, 47
      %p153 = scmp.ne.s32.totalorder %s148, %s150
      %p154 = scmp.eq.s32.totalorder %s18, 0
      %p155 = por %p153, %p154
      %p156 = scmp.ne.s32.totalorder %s148, %s150
      %p157 = scmp.eq.s32.totalorder %s23, 47
      %p158 = por %p156, %p157
      %p159 = scmp.ne.s32.totalorder %s150, %s151
      %p160 = scmp.eq.s32.totalorder %s23, 0
      %p161 = por %p159, %p160
      %p162 = scmp.ne.s32.totalorder %s150, %s151
      %p163 = scmp.eq.s32.totalorder %s24, 47
      %p164 = por %p162, %p163
      %p166 = scmp.ne.s32.totalorder %s151, %s165
      %p167 = scmp.eq.s32.totalorder %s24, 0
      %p168 = por %p166, %p167
      %s169 = ssub.s32 %s25, %s44
      %s170 = ssub.s32 %s26, %s40
      %s171 = sor.u32 %s169, %s170
      %p172 = scmp.eq.s32.totalorder %s171, 0
      %s174 = sadd.s32 %s173, 1
      %s175 = scalar_select %p172, %s173, %s174
      %p178 = pneg %p172
      %p179 = scmp.eq.s32.totalorder %s18, 47
      %p180 = por %p178, %p179
      %p181 = scmp.ne.s32.totalorder %s173, %s176
      %p182 = scmp.eq.s32.totalorder %s18, 0
      %p183 = por %p181, %p182
      %p184 = scmp.ne.s32.totalorder %s173, %s176
      %p185 = scmp.eq.s32.totalorder %s23, 47
      %p186 = por %p184, %p185
      %p187 = scmp.ne.s32.totalorder %s176, %s177
      %p188 = scmp.eq.s32.totalorder %s23, 0
      %p189 = por %p187, %p188
      %p190 = scmp.ne.s32.totalorder %s176, %s177
      %p191 = scmp.eq.s32.totalorder %s24, 47
      %p192 = por %p190, %p191
      %p194 = scmp.ne.s32.totalorder %s177, %s193
      %p195 = scmp.eq.s32.totalorder %s24, 0
      %p196 = por %p194, %p195
      %s197 = ssub.s32 %s25, %s44
      %s198 = ssub.s32 %s26, %s40
      %s199 = sor.u32 %s197, %s198
      %p200 = scmp.eq.s32.totalorder %s199, 0
      %s202 = sadd.s32 %s201, 1
      %s203 = scalar_select %p200, %s201, %s202
      %p206 = pneg %p200
      %p207 = scmp.eq.s32.totalorder %s18, 47
      %p208 = por %p206, %p207
      %p209 = scmp.ne.s32.totalorder %s201, %s204
      %p210 = scmp.eq.s32.totalorder %s18, 0
      %p211 = por %p209, %p210
      %p212 = scmp.ne.s32.totalorder %s201, %s204
      %p213 = scmp.eq.s32.totalorder %s23, 47
      %p214 = por %p212, %p213
      %p215 = scmp.ne.s32.totalorder %s204, %s205
      %p216 = scmp.eq.s32.totalorder %s23, 0
      %p217 = por %p215, %p216
      %p218 = scmp.ne.s32.totalorder %s204, %s205
      %p219 = scmp.eq.s32.totalorder %s24, 47
      %p220 = por %p218, %p219
      %p222 = scmp.ne.s32.totalorder %s205, %s221
      %p223 = scmp.eq.s32.totalorder %s24, 0
      %p224 = por %p222, %p223
      %p225 = scmp.le.s32.totalorder 1, %s18
      %p226 = scmp.lt.s32.totalorder %s18, 49
      %p227 = pnand %p225, %p226
      %p228 = pneg %p227
      // Predicated region
      $region9: #{_lambda_.3} parent=5 // pred_check
        _
      $region10: #{_lambda_.3} parent=5 // pred_check_branch
        %230 = sbr.rel (%p227) target = $region12
      $region11: #{_lambda_.3} parent=5 // pred_region
        %s231 = ssub.s32 %s18, 1
        // Predicated region
        $region13: #{_lambda_.3} parent=11 // pred_check
          %p232 = pneg %p98
        $region14: #{_lambda_.3} parent=11 // pred_check_branch
          %234 = sbr.rel (%p232) target = $region16
        $region15: #{_lambda_.3} parent=11 // pred_region
          _
        $region16: #{_lambda_.3} parent=11 // pred_fallthru
          _
        // Predicated region
        $region17: #{_lambda_.3} parent=11 // pred_check
          %p235 = pneg %p119
        $region18: #{_lambda_.3} parent=11 // pred_check_branch
          %237 = sbr.rel (%p235) target = $region20
        $region19: #{_lambda_.3} parent=11 // pred_region
          _
        $region20: #{_lambda_.3} parent=11 // pred_fallthru
          _
        // Predicated region
        $region21: #{_lambda_.3} parent=11 // pred_check
          %p238 = pneg %p140
        $region22: #{_lambda_.3} parent=11 // pred_check_branch
          %240 = sbr.rel (%p238) target = $region24
        $region23: #{_lambda_.3} parent=11 // pred_region
          _
        $region24: #{_lambda_.3} parent=11 // pred_fallthru
          _
        // Predicated region
        $region25: #{_lambda_.3} parent=11 // pred_check
          %p241 = pneg %p161
        $region26: #{_lambda_.3} parent=11 // pred_check_branch
          %243 = sbr.rel (%p241) target = $region28
        $region27: #{_lambda_.3} parent=11 // pred_region
          _
        $region28: #{_lambda_.3} parent=11 // pred_fallthru
          _
      $region12: #{_lambda_.3} parent=5 // pred_fallthru
        _
      %p244 = scmp.lt.s32.totalorder %s18, 48
      // Predicated region
      $region29: #{_lambda_.3} parent=5 // pred_check
        %p245 = pneg %p244
      $region30: #{_lambda_.3} parent=5 // pred_check_branch
        %247 = sbr.rel (%p245) target = $region32
      $region31: #{_lambda_.3} parent=5 // pred_region
        // Predicated region
        $region33: #{_lambda_.3} parent=31 // pred_check
          %p248 = pneg %p71
        $region34: #{_lambda_.3} parent=31 // pred_check_branch
          %250 = sbr.rel (%p248) target = $region36
        $region35: #{_lambda_.3} parent=31 // pred_region
          %s251 = sadd.s32 %s26, %s27
          %s252 = ssub.s32 %s251, 1
          %p253 = scmp.gt.s32.totalorder %s252, 0
          %s254 = scalar_select %p253, %s252, 0
          %p255 = scmp.lt.s32.totalorder %s254, 7
          %s256 = scalar_select %p255, %s254, 7
          %p257 = scmp.lt.s32.totalorder %s25, 1
          %s258 = scalar_select %p257, %s25, 1
          %p259 = scmp.lt.s32.totalorder %s256, 7
          %s260 = scalar_select %p259, %s256, 7
          %s261 = smul.addr %s260, 8
          %s262 = smul.addr %s258, 64
          %s263 = sadd.s32 %s261, %s262
          %s264 = smul.addr %s263, 8
          %s265 = scalar_lea.vmem %s0, %s264
          %s266 = sadd.s32 %s26, %s27
          %s267 = ssub.s32 %s266, 1
          %p268 = scmp.gt.s32.totalorder %s267, 0
          %s269 = scalar_select %p268, %s267, 0
          %p270 = scmp.lt.s32.totalorder %s269, 7
          %s271 = scalar_select %p270, %s269, 7
        $region36: #{_lambda_.3} parent=31 // pred_fallthru
          _
        // Predicated region
        $region37: #{_lambda_.3} parent=31 // pred_check
          %p272 = pneg %p183
        $region38: #{_lambda_.3} parent=31 // pred_check_branch
          %274 = sbr.rel (%p272) target = $region40
        $region39: #{_lambda_.3} parent=31 // pred_region
          %s275 = sand.u32 %s173, 1
          %s276 = scalar_lea.sflag [#allocation5], %s275
          %s277 = sand.u32 %s173, 1
          %s278 = smul.addr %s277, 64
          %s279 = scalar_lea.vmem [#allocation4], %s278
          %281 = vsyncadd %s276, 0
          %s282 = smul.addr %s26, 8
          %s283 = smul.addr %s25, 64
          %s284 = sadd.s32 %s282, %s283
          %s285 = smul.addr %s284, 8
          %s286 = scalar_lea.hbm %s5, %s285
          %s287 = sshll.u32 %s286, 4
          %s288 = int_to_ptr.hbm [resolvable:$true] %s287
          %s289 = sshll.u32 %s279, 4
          %s290 = int_to_ptr.vmem [resolvable:$true] %s289
          %295 = dma.hbm_to_vmem [thread:$0]  %s288, 1024, %s290, %s276, 128, 128, 8
        $region40: #{_lambda_.3} parent=31 // pred_fallthru
          _
      $region32: #{_lambda_.3} parent=5 // pred_fallthru
        _
      %p296 = scmp.le.s32.totalorder 1, %s18
      %p297 = scmp.lt.s32.totalorder %s18, 49
      %p298 = pnand %p296, %p297
      %p299 = pneg %p298
      // Predicated region
      $region41: #{_lambda_.3} parent=5 // pred_check
        _
      $region42: #{_lambda_.3} parent=5 // pred_check_branch
        %301 = sbr.rel (%p298) target = $region44
      $region43: #{_lambda_.3} parent=5 // pred_region
        %s302 = ssub.s32 %s18, 1
        %s303 = sand.u32 %s176, 1
        %s304 = scalar_lea.sflag [#allocation5], %s303
        %s305 = sand.u32 %s176, 1
        %s306 = smul.addr %s305, 64
        %s307 = scalar_lea.vmem [#allocation4], %s306
        // Predicated region
        $region45: #{_lambda_.3} parent=43 // pred_check
          %p308 = pneg %p189
        $region46: #{_lambda_.3} parent=43 // pred_check_branch
          %310 = sbr.rel (%p308) target = $region48
        $region47: #{_lambda_.3} parent=43 // pred_region
          %312 = dma.done %s304, 1024
        $region48: #{_lambda_.3} parent=43 // pred_fallthru
          _
        %s313 = sadd.s32 %s29, %s30
        %s314 = ssub.s32 %s313, 1
        %p315 = scmp.gt.s32.totalorder %s314, 0
        %s316 = scalar_select %p315, %s314, 0
        %p317 = scmp.lt.s32.totalorder %s316, 7
        %s318 = scalar_select %p317, %s316, 7
        %p319 = scmp.lt.s32.totalorder %s28, 1
        %s320 = scalar_select %p319, %s28, 1
        %p321 = scmp.lt.s32.totalorder %s318, 7
        %s322 = scalar_select %p321, %s318, 7
        %s323 = smul.addr %s322, 8
        %s324 = smul.addr %s320, 64
        %s325 = sadd.s32 %s323, %s324
        %s326 = smul.addr %s325, 8
        %s327 = scalar_lea.vmem %s0, %s326
        %p328 = pneg %p77
        %p329 = pneg %p74
        %p330 = pneg %p98
        %p331 = pneg %p95
        %p332 = pneg %p119
        %p333 = pneg %p116
        %p334 = pneg %p140
        %p335 = pneg %p137
        %p336 = pneg %p161
        %p337 = pneg %p158
        %s338 = sand.u32 %s176, 1
        %s339 = scalar_lea.sflag [#allocation5], %s338
        %s340 = sand.u32 %s176, 1
        %s341 = smul.addr %s340, 64
        %s342 = scalar_lea.vmem [#allocation4], %s341
        %p343 = pneg %p189
        %p344 = pneg %p186
        %p345 = pneg %p217
        %p346 = pneg %p214
        %s347 = sand.u32 %s204, 1
        %s348 = scalar_lea.sflag [#allocation6], %s347
        %s349 = sand.u32 %s204, 1
        %s350 = smul.addr %s349, 64
        %s351 = scalar_lea.vmem [#allocation7], %s350
        %s352 = sadd.s32 %s29, %s30
        %s353 = ssub.s32 %s352, 1
        %p354 = scmp.gt.s32.totalorder %s353, 0
        %s355 = scalar_select %p354, %s353, 0
        %p356 = scmp.lt.s32.totalorder %s355, 7
        %s357 = scalar_select %p356, %s355, 7
        %p358 = scmp.lt.s32.totalorder %s28, 1
        %s359 = scalar_select %p358, %s28, 1
        %p360 = scmp.lt.s32.totalorder %s357, 7
        %s361 = scalar_select %p360, %s357, 7
        %s362 = smul.addr %s361, 8
        %s363 = smul.addr %s359, 64
        %s364 = sadd.s32 %s362, %s363
        %s365 = smul.addr %s364, 8
        %s366 = scalar_lea.vmem %s0, %s365
        %s367 = sadd.s32 %s29, %s30
        %s368 = ssub.s32 %s367, 1
        %p369 = scmp.gt.s32.totalorder %s368, 0
        %s370 = scalar_select %p369, %s368, 0
        %p371 = scmp.lt.s32.totalorder %s370, 7
        %s372 = scalar_select %p371, %s370, 7
        %s373 = sadd.s32 %s29, %s30
        %s374 = ssub.s32 %s373, 1
        %p375 = scmp.ge.s32.totalorder %s374, 0
        %p376 = scmp.lt.s32.totalorder %s374, 8
        %p377 = pnand %p375, %p376
        %p378 = pneg %p377
        %p379 = scmp.eq.s32.totalorder %s30, 0
        // Predicated region
        $region49: #{_lambda_.3} parent=43 // pred_check
          %p380 = pneg %p379
        $region50: #{_lambda_.3} parent=43 // pred_check_branch
          %382 = sbr.rel (%p380) target = $region52
        $region51: #{_lambda_.3} parent=43 // pred_region
          %vm383 = vcmask 31744
          %384 = vst.msk [vmem:[#allocation2] sm:$0xff] %vm383, 0.0
          %vm385 = vcmask 25600
          %386 = vst.msk [vmem:[#allocation2 + $0x8] sm:$0x3] %vm385, 0.0
          %387 = vst.msk [vmem:[#allocation2 + $0x10] sm:$0xff] %vm383, 0.0
          %388 = vst.msk [vmem:[#allocation2 + $0x18] sm:$0x3] %vm385, 0.0
          %389 = vst.msk [vmem:[#allocation2 + $0x20] sm:$0xff] %vm383, 0.0
          %390 = vst.msk [vmem:[#allocation2 + $0x28] sm:$0x3] %vm385, 0.0
          %391 = vst.msk [vmem:[#allocation2 + $0x30] sm:$0xff] %vm383, 0.0
          %392 = vst.msk [vmem:[#allocation2 + $0x38] sm:$0x3] %vm385, 0.0
          %393 = vst.msk [vmem:[#allocation2 + $0x40] sm:$0xff] %vm383, 0.0
          %394 = vst.msk [vmem:[#allocation2 + $0x48] sm:$0x3] %vm385, 0.0
          %395 = vst.msk [vmem:[#allocation2 + $0x50] sm:$0xff] %vm383, 0.0
          %396 = vst.msk [vmem:[#allocation2 + $0x58] sm:$0x3] %vm385, 0.0
          %397 = vst.msk [vmem:[#allocation2 + $0x60] sm:$0xff] %vm383, 0.0
          %398 = vst.msk [vmem:[#allocation2 + $0x68] sm:$0x3] %vm385, 0.0
          %399 = vst.msk [vmem:[#allocation2 + $0x70] sm:$0xff] %vm383, 0.0
          %400 = vst.msk [vmem:[#allocation2 + $0x78] sm:$0x3] %vm385, 0.0
          %401 = vst.msk [vmem:[#allocation2 + $0x80] sm:$0xff] %vm383, 0.0
          %402 = vst.msk [vmem:[#allocation2 + $0x88] sm:$0x3] %vm385, 0.0
          %403 = vst.msk [vmem:[#allocation2 + $0x90] sm:$0xff] %vm383, 0.0
          %404 = vst.msk [vmem:[#allocation2 + $0x98] sm:$0x3] %vm385, 0.0
        $region52: #{_lambda_.3} parent=43 // pred_fallthru
          _
        %p405 = pneg %p378
        %p406 = pnand %p379, %p405
        %p407 = pneg %p406
        // Predicated region
        $region53: #{_lambda_.3} parent=43 // pred_check
          _
        $region54: #{_lambda_.3} parent=43 // pred_check_branch
          %409 = sbr.rel (%p406) target = $region56
        $region55: #{_lambda_.3} parent=43 // pred_region
          %vm410 = vcmask 31744
          %411 = vst.msk [vmem:[#allocation3] sm:$0xff] %vm410, 0.0
          %412 = vst.msk [vmem:[#allocation3 + $0x8] sm:$0xff] %vm410, 0.0
          %413 = vst.msk [vmem:[#allocation3 + $0x10] sm:$0xff] %vm410, 0.0
          %414 = vst.msk [vmem:[#allocation3 + $0x18] sm:$0xff] %vm410, 0.0
          %415 = vst.msk [vmem:[#allocation3 + $0x20] sm:$0xff] %vm410, 0.0
          %416 = vst.msk [vmem:[#allocation3 + $0x28] sm:$0xff] %vm410, 0.0
          %417 = vst.msk [vmem:[#allocation3 + $0x30] sm:$0xff] %vm410, 0.0
          %418 = vst.msk [vmem:[#allocation3 + $0x38] sm:$0xff] %vm410, 0.0
        $region56: #{_lambda_.3} parent=43 // pred_fallthru
          _
        // Predicated region
        $region57: #{_lambda_.3} parent=43 // pred_check
          _
        $region58: #{_lambda_.3} parent=43 // pred_check_branch
          %420 = sbr.rel (%p377) target = $region60
        $region59: #{_lambda_.3} parent=43 // pred_region
          %v421 = vld [vmem:[%s366] sm:$0xff]
          %v422 = vld [vmem:[%s366 + $0x8] sm:$0xff]
          %v423 = vld [vmem:[%s366 + $0x10] sm:$0xff]
          %v424 = vld [vmem:[%s366 + $0x18] sm:$0xff]
          %v425 = vld [vmem:[%s366 + $0x20] sm:$0xff]
          %v426 = vld [vmem:[%s366 + $0x28] sm:$0xff]
          %v427 = vld [vmem:[%s366 + $0x30] sm:$0xff]
          %v428 = vld [vmem:[%s366 + $0x38] sm:$0xff]
          %s429 = scalar_lea.vmem [#allocation2], 16
          %vm430 = vcmask 31744
          %431 = vst.msk [vmem:[%s429 + $0x1] sm:$0xff] %vm430, %v421
          %432 = vst.msk [vmem:[%s429 + $0x11] sm:$0xff] %vm430, %v422
          %433 = vst.msk [vmem:[%s429 + $0x21] sm:$0xff] %vm430, %v423
          %434 = vst.msk [vmem:[%s429 + $0x31] sm:$0xff] %vm430, %v424
          %435 = vst.msk [vmem:[%s429 + $0x41] sm:$0xff] %vm430, %v425
          %436 = vst.msk [vmem:[%s429 + $0x51] sm:$0xff] %vm430, %v426
          %437 = vst.msk [vmem:[%s429 + $0x61] sm:$0xff] %vm430, %v427
          %438 = vst.msk [vmem:[%s429 + $0x71] sm:$0xff] %vm430, %v428
          %v439 = vld [vmem:[#allocation2] sm:$0xff]
          %v440 = vld [vmem:[#allocation2 + $0x10] sm:$0xff]
          %v441 = vld [vmem:[#allocation2 + $0x20] sm:$0xff]
          %v442 = vld [vmem:[#allocation2 + $0x30] sm:$0xff]
          %v443 = vld [vmem:[#allocation2 + $0x40] sm:$0xff]
          %v444 = vld [vmem:[#allocation2 + $0x50] sm:$0xff]
          %v445 = vld [vmem:[#allocation2 + $0x60] sm:$0xff]
          %v446 = vld [vmem:[#allocation2 + $0x70] sm:$0xff]
          %s447 = smul.u32 %s30, 9
          %s448 = smul.u32 %s447, 4
          %s449 = scalar_lea.vmem %s1, %s448
          %v450 = vld [vmem:[%s449] sm:$0xf]
          %v451 = vld [vmem:[#allocation2 + $0x1] sm:$0xff]
          %v452 = vld [vmem:[#allocation2 + $0x11] sm:$0xff]
          %v453 = vld [vmem:[#allocation2 + $0x21] sm:$0xff]
          %v454 = vld [vmem:[#allocation2 + $0x31] sm:$0xff]
          %v455 = vld [vmem:[#allocation2 + $0x41] sm:$0xff]
          %v456 = vld [vmem:[#allocation2 + $0x51] sm:$0xff]
          %v457 = vld [vmem:[#allocation2 + $0x61] sm:$0xff]
          %v458 = vld [vmem:[#allocation2 + $0x71] sm:$0xff]
          %s459 = sadd.s32 %s447, 1
          %s460 = smul.u32 %s459, 4
          %s461 = scalar_lea.vmem %s1, %s460
          %v462 = vld [vmem:[%s461] sm:$0xf]
          %v464 = vsel %vm430, %v451, 0
          %v467 = vsel %vm430, %v452, 0
          %v470 = vsel %vm430, %v453, 0
          %v473 = vsel %vm430, %v454, 0
          %v476 = vsel %vm430, %v455, 0
          %v479 = vsel %vm430, %v456, 0
          %v482 = vsel %vm430, %v457, 0
          %v485 = vsel %vm430, %v458, 0
          %vm487 = vcmask 1043456
          %v489 = vsel %vm487, %v462, 0
          %491 = vmatpush.msra.mxu0 0.0
          %492 = vmatpush.msra.mxu0 0.0
          %493 = vmatpush.msra.mxu0 0.0
          %494 = vmatpush.msra.mxu0 0.0
          %495 = vmatpush.msra.mxu0 0.0
          %496 = vmatpush.msra.mxu0 0.0
          %497 = vmatpush.msra.mxu0 0.0
          %498 = vmatpush.msra.mxu0 0.0
          %499 = vmatpush.msra.mxu0 0.0
          %500 = vmatpush.msra.mxu0 0.0
          %501 = vmatpush.msra.mxu0 0.0
          %502 = vmatpush.msra.mxu0 0.0
          %503 = vmatpush.msra.mxu0 0.0
          %504 = vmatpush.msra.mxu0 0.0
          %505 = vmatpush.msra.mxu0 0.0
          %506 = vmatpush.msra.mxu0 %v489
          %507 = vmatmul.f32.gmra.mxu0 %v464
          %v508 = vpop.f32.mrf.mxu0
          %v509 = vadd.f32 0.0, %v508
          %510 = vmatmul.f32.gmra.mxu0 %v467
          %v511 = vpop.f32.mrf.mxu0
          %v512 = vadd.f32 0.0, %v511
          %513 = vmatmul.f32.gmra.mxu0 %v470
          %v514 = vpop.f32.mrf.mxu0
          %v515 = vadd.f32 0.0, %v514
          %516 = vmatmul.f32.gmra.mxu0 %v473
          %v517 = vpop.f32.mrf.mxu0
          %v518 = vadd.f32 0.0, %v517
          %519 = vmatmul.f32.gmra.mxu0 %v476
          %v520 = vpop.f32.mrf.mxu0
          %v521 = vadd.f32 0.0, %v520
          %522 = vmatmul.f32.gmra.mxu0 %v479
          %v523 = vpop.f32.mrf.mxu0
          %v524 = vadd.f32 0.0, %v523
          %525 = vmatmul.f32.gmra.mxu0 %v482
          %v526 = vpop.f32.mrf.mxu0
          %v527 = vadd.f32 0.0, %v526
          %528 = vmatmul.f32.gmra.mxu0 %v485
          %v529 = vpop.f32.mrf.mxu0
          %v530 = vadd.f32 0.0, %v529
          %531 = vdwg.mxu0
          %v533 = vsel %vm430, %v439, 0
          %v536 = vsel %vm430, %v440, 0
          %v539 = vsel %vm430, %v441, 0
          %v542 = vsel %vm430, %v442, 0
          %v545 = vsel %vm430, %v443, 0
          %v548 = vsel %vm430, %v444, 0
          %v551 = vsel %vm430, %v445, 0
          %v554 = vsel %vm430, %v446, 0
          %v557 = vsel %vm487, %v450, 0
          %559 = vmatpush.msra.mxu0 0.0
          %560 = vmatpush.msra.mxu0 0.0
          %561 = vmatpush.msra.mxu0 0.0
          %562 = vmatpush.msra.mxu0 0.0
          %563 = vmatpush.msra.mxu0 0.0
          %564 = vmatpush.msra.mxu0 0.0
          %565 = vmatpush.msra.mxu0 0.0
          %566 = vmatpush.msra.mxu0 0.0
          %567 = vmatpush.msra.mxu0 0.0
          %568 = vmatpush.msra.mxu0 0.0
          %569 = vmatpush.msra.mxu0 0.0
          %570 = vmatpush.msra.mxu0 0.0
          %571 = vmatpush.msra.mxu0 0.0
          %572 = vmatpush.msra.mxu0 0.0
          %573 = vmatpush.msra.mxu0 0.0
          %574 = vmatpush.msra.mxu0 %v557
          %575 = vmatmul.f32.gmra.mxu0 %v533
          %v576 = vpop.f32.mrf.mxu0
          %v577 = vadd.f32 %v509, %v576
          %578 = vmatmul.f32.gmra.mxu0 %v536
          %v579 = vpop.f32.mrf.mxu0
          %v580 = vadd.f32 %v512, %v579
          %581 = vmatmul.f32.gmra.mxu0 %v539
          %v582 = vpop.f32.mrf.mxu0
          %v583 = vadd.f32 %v515, %v582
          %584 = vmatmul.f32.gmra.mxu0 %v542
          %v585 = vpop.f32.mrf.mxu0
          %v586 = vadd.f32 %v518, %v585
          %587 = vmatmul.f32.gmra.mxu0 %v545
          %v588 = vpop.f32.mrf.mxu0
          %v589 = vadd.f32 %v521, %v588
          %590 = vmatmul.f32.gmra.mxu0 %v548
          %v591 = vpop.f32.mrf.mxu0
          %v592 = vadd.f32 %v524, %v591
          %593 = vmatmul.f32.gmra.mxu0 %v551
          %v594 = vpop.f32.mrf.mxu0
          %v595 = vadd.f32 %v527, %v594
          %596 = vmatmul.f32.gmra.mxu0 %v554
          %v597 = vpop.f32.mrf.mxu0
          %v598 = vadd.f32 %v530, %v597
          %599 = vdwg.mxu0
          %v600 = vld [vmem:[#allocation2 + $0x2] sm:$0xff]
          %v601 = vld [vmem:[#allocation2 + $0x12] sm:$0xff]
          %v602 = vld [vmem:[#allocation2 + $0x22] sm:$0xff]
          %v603 = vld [vmem:[#allocation2 + $0x32] sm:$0xff]
          %v604 = vld [vmem:[#allocation2 + $0x42] sm:$0xff]
          %v605 = vld [vmem:[#allocation2 + $0x52] sm:$0xff]
          %v606 = vld [vmem:[#allocation2 + $0x62] sm:$0xff]
          %v607 = vld [vmem:[#allocation2 + $0x72] sm:$0xff]
          %s608 = sadd.s32 %s447, 2
          %s609 = smul.u32 %s608, 4
          %s610 = scalar_lea.vmem %s1, %s609
          %v611 = vld [vmem:[%s610] sm:$0xf]
          %v613 = vsel %vm430, %v600, 0
          %v616 = vsel %vm430, %v601, 0
          %v619 = vsel %vm430, %v602, 0
          %v622 = vsel %vm430, %v603, 0
          %v625 = vsel %vm430, %v604, 0
          %v628 = vsel %vm430, %v605, 0
          %v631 = vsel %vm430, %v606, 0
          %v634 = vsel %vm430, %v607, 0
          %v637 = vsel %vm487, %v611, 0
          %639 = vmatpush.msra.mxu0 0.0
          %640 = vmatpush.msra.mxu0 0.0
          %641 = vmatpush.msra.mxu0 0.0
          %642 = vmatpush.msra.mxu0 0.0
          %643 = vmatpush.msra.mxu0 0.0
          %644 = vmatpush.msra.mxu0 0.0
          %645 = vmatpush.msra.mxu0 0.0
          %646 = vmatpush.msra.mxu0 0.0
          %647 = vmatpush.msra.mxu0 0.0
          %648 = vmatpush.msra.mxu0 0.0
          %649 = vmatpush.msra.mxu0 0.0
          %650 = vmatpush.msra.mxu0 0.0
          %651 = vmatpush.msra.mxu0 0.0
          %652 = vmatpush.msra.mxu0 0.0
          %653 = vmatpush.msra.mxu0 0.0
          %654 = vmatpush.msra.mxu0 %v637
          %655 = vmatmul.f32.gmra.mxu0 %v613
          %v656 = vpop.f32.mrf.mxu0
          %v657 = vadd.f32 0.0, %v656
          %658 = vmatmul.f32.gmra.mxu0 %v616
          %v659 = vpop.f32.mrf.mxu0
          %v660 = vadd.f32 0.0, %v659
          %661 = vmatmul.f32.gmra.mxu0 %v619
          %v662 = vpop.f32.mrf.mxu0
          %v663 = vadd.f32 0.0, %v662
          %664 = vmatmul.f32.gmra.mxu0 %v622
          %v665 = vpop.f32.mrf.mxu0
          %v666 = vadd.f32 0.0, %v665
          %667 = vmatmul.f32.gmra.mxu0 %v625
          %v668 = vpop.f32.mrf.mxu0
          %v669 = vadd.f32 0.0, %v668
          %670 = vmatmul.f32.gmra.mxu0 %v628
          %v671 = vpop.f32.mrf.mxu0
          %v672 = vadd.f32 0.0, %v671
          %673 = vmatmul.f32.gmra.mxu0 %v631
          %v674 = vpop.f32.mrf.mxu0
          %v675 = vadd.f32 0.0, %v674
          %676 = vmatmul.f32.gmra.mxu0 %v634
          %v677 = vpop.f32.mrf.mxu0
          %v678 = vadd.f32 0.0, %v677
          %679 = vdwg.mxu0
          %v680 = vadd.f32 %v577, %v657
          %v681 = vadd.f32 %v580, %v660
          %v682 = vadd.f32 %v583, %v663
          %v683 = vadd.f32 %v586, %v666
          %v684 = vadd.f32 %v589, %v669
          %v685 = vadd.f32 %v592, %v672
          %v686 = vadd.f32 %v595, %v675
          %v687 = vadd.f32 %v598, %v678
          %v688 = vld [vmem:[%s429] sm:$0xff]
          %v689 = vld [vmem:[%s429 + $0x10] sm:$0xff]
          %v690 = vld [vmem:[%s429 + $0x20] sm:$0xff]
          %v691 = vld [vmem:[%s429 + $0x30] sm:$0xff]
          %v692 = vld [vmem:[%s429 + $0x40] sm:$0xff]
          %v693 = vld [vmem:[%s429 + $0x50] sm:$0xff]
          %v694 = vld [vmem:[%s429 + $0x60] sm:$0xff]
          %v695 = vld [vmem:[%s429 + $0x70] sm:$0xff]
          %s696 = sadd.s32 %s447, 3
          %s697 = smul.u32 %s696, 4
          %s698 = scalar_lea.vmem %s1, %s697
          %v699 = vld [vmem:[%s698] sm:$0xf]
          %v701 = vsel %vm430, %v688, 0
          %v704 = vsel %vm430, %v689, 0
          %v707 = vsel %vm430, %v690, 0
          %v710 = vsel %vm430, %v691, 0
          %v713 = vsel %vm430, %v692, 0
          %v716 = vsel %vm430, %v693, 0
          %v719 = vsel %vm430, %v694, 0
          %v722 = vsel %vm430, %v695, 0
          %v725 = vsel %vm487, %v699, 0
          %727 = vmatpush.msra.mxu0 0.0
          %728 = vmatpush.msra.mxu0 0.0
          %729 = vmatpush.msra.mxu0 0.0
          %730 = vmatpush.msra.mxu0 0.0
          %731 = vmatpush.msra.mxu0 0.0
          %732 = vmatpush.msra.mxu0 0.0
          %733 = vmatpush.msra.mxu0 0.0
          %734 = vmatpush.msra.mxu0 0.0
          %735 = vmatpush.msra.mxu0 0.0
          %736 = vmatpush.msra.mxu0 0.0
          %737 = vmatpush.msra.mxu0 0.0
          %738 = vmatpush.msra.mxu0 0.0
          %739 = vmatpush.msra.mxu0 0.0
          %740 = vmatpush.msra.mxu0 0.0
          %741 = vmatpush.msra.mxu0 0.0
          %742 = vmatpush.msra.mxu0 %v725
          %743 = vmatmul.f32.gmra.mxu0 %v701
          %v744 = vpop.f32.mrf.mxu0
          %v745 = vadd.f32 0.0, %v744
          %746 = vmatmul.f32.gmra.mxu0 %v704
          %v747 = vpop.f32.mrf.mxu0
          %v748 = vadd.f32 0.0, %v747
          %749 = vmatmul.f32.gmra.mxu0 %v707
          %v750 = vpop.f32.mrf.mxu0
          %v751 = vadd.f32 0.0, %v750
          %752 = vmatmul.f32.gmra.mxu0 %v710
          %v753 = vpop.f32.mrf.mxu0
          %v754 = vadd.f32 0.0, %v753
          %755 = vmatmul.f32.gmra.mxu0 %v713
          %v756 = vpop.f32.mrf.mxu0
          %v757 = vadd.f32 0.0, %v756
          %758 = vmatmul.f32.gmra.mxu0 %v716
          %v759 = vpop.f32.mrf.mxu0
          %v760 = vadd.f32 0.0, %v759
          %761 = vmatmul.f32.gmra.mxu0 %v719
          %v762 = vpop.f32.mrf.mxu0
          %v763 = vadd.f32 0.0, %v762
          %764 = vmatmul.f32.gmra.mxu0 %v722
          %v765 = vpop.f32.mrf.mxu0
          %v766 = vadd.f32 0.0, %v765
          %767 = vdwg.mxu0
          %v768 = vadd.f32 %v680, %v745
          %v769 = vadd.f32 %v681, %v748
          %v770 = vadd.f32 %v682, %v751
          %v771 = vadd.f32 %v683, %v754
          %v772 = vadd.f32 %v684, %v757
          %v773 = vadd.f32 %v685, %v760
          %v774 = vadd.f32 %v686, %v763
          %v775 = vadd.f32 %v687, %v766
          %v776 = vld [vmem:[%s429 + $0x1] sm:$0xff]
          %v777 = vld [vmem:[%s429 + $0x11] sm:$0xff]
          %v778 = vld [vmem:[%s429 + $0x21] sm:$0xff]
          %v779 = vld [vmem:[%s429 + $0x31] sm:$0xff]
          %v780 = vld [vmem:[%s429 + $0x41] sm:$0xff]
          %v781 = vld [vmem:[%s429 + $0x51] sm:$0xff]
          %v782 = vld [vmem:[%s429 + $0x61] sm:$0xff]
          %v783 = vld [vmem:[%s429 + $0x71] sm:$0xff]
          %s784 = sadd.s32 %s447, 4
          %s785 = smul.u32 %s784, 4
          %s786 = scalar_lea.vmem %s1, %s785
          %v787 = vld [vmem:[%s786] sm:$0xf]
          %v789 = vsel %vm430, %v776, 0
          %v792 = vsel %vm430, %v777, 0
          %v795 = vsel %vm430, %v778, 0
          %v798 = vsel %vm430, %v779, 0
          %v801 = vsel %vm430, %v780, 0
          %v804 = vsel %vm430, %v781, 0
          %v807 = vsel %vm430, %v782, 0
          %v810 = vsel %vm430, %v783, 0
          %v813 = vsel %vm487, %v787, 0
          %815 = vmatpush.msra.mxu0 0.0
          %816 = vmatpush.msra.mxu0 0.0
          %817 = vmatpush.msra.mxu0 0.0
          %818 = vmatpush.msra.mxu0 0.0
          %819 = vmatpush.msra.mxu0 0.0
          %820 = vmatpush.msra.mxu0 0.0
          %821 = vmatpush.msra.mxu0 0.0
          %822 = vmatpush.msra.mxu0 0.0
          %823 = vmatpush.msra.mxu0 0.0
          %824 = vmatpush.msra.mxu0 0.0
          %825 = vmatpush.msra.mxu0 0.0
          %826 = vmatpush.msra.mxu0 0.0
          %827 = vmatpush.msra.mxu0 0.0
          %828 = vmatpush.msra.mxu0 0.0
          %829 = vmatpush.msra.mxu0 0.0
          %830 = vmatpush.msra.mxu0 %v813
          %831 = vmatmul.f32.gmra.mxu0 %v789
          %v832 = vpop.f32.mrf.mxu0
          %v833 = vadd.f32 0.0, %v832
          %834 = vmatmul.f32.gmra.mxu0 %v792
          %v835 = vpop.f32.mrf.mxu0
          %v836 = vadd.f32 0.0, %v835
          %837 = vmatmul.f32.gmra.mxu0 %v795
          %v838 = vpop.f32.mrf.mxu0
          %v839 = vadd.f32 0.0, %v838
          %840 = vmatmul.f32.gmra.mxu0 %v798
          %v841 = vpop.f32.mrf.mxu0
          %v842 = vadd.f32 0.0, %v841
          %843 = vmatmul.f32.gmra.mxu0 %v801
          %v844 = vpop.f32.mrf.mxu0
          %v845 = vadd.f32 0.0, %v844
          %846 = vmatmul.f32.gmra.mxu0 %v804
          %v847 = vpop.f32.mrf.mxu0
          %v848 = vadd.f32 0.0, %v847
          %849 = vmatmul.f32.gmra.mxu0 %v807
          %v850 = vpop.f32.mrf.mxu0
          %v851 = vadd.f32 0.0, %v850
          %852 = vmatmul.f32.gmra.mxu0 %v810
          %v853 = vpop.f32.mrf.mxu0
          %v854 = vadd.f32 0.0, %v853
          %855 = vdwg.mxu0
          %v856 = vadd.f32 %v768, %v833
          %v857 = vadd.f32 %v769, %v836
          %v858 = vadd.f32 %v770, %v839
          %v859 = vadd.f32 %v771, %v842
          %v860 = vadd.f32 %v772, %v845
          %v861 = vadd.f32 %v773, %v848
          %v862 = vadd.f32 %v774, %v851
          %v863 = vadd.f32 %v775, %v854
          %v864 = vld [vmem:[%s429 + $0x2] sm:$0xff]
          %v865 = vld [vmem:[%s429 + $0x12] sm:$0xff]
          %v866 = vld [vmem:[%s429 + $0x22] sm:$0xff]
          %v867 = vld [vmem:[%s429 + $0x32] sm:$0xff]
          %v868 = vld [vmem:[%s429 + $0x42] sm:$0xff]
          %v869 = vld [vmem:[%s429 + $0x52] sm:$0xff]
          %v870 = vld [vmem:[%s429 + $0x62] sm:$0xff]
          %v871 = vld [vmem:[%s429 + $0x72] sm:$0xff]
          %s872 = sadd.s32 %s447, 5
          %s873 = smul.u32 %s872, 4
          %s874 = scalar_lea.vmem %s1, %s873
          %v875 = vld [vmem:[%s874] sm:$0xf]
          %v877 = vsel %vm430, %v864, 0
          %v880 = vsel %vm430, %v865, 0
          %v883 = vsel %vm430, %v866, 0
          %v886 = vsel %vm430, %v867, 0
          %v889 = vsel %vm430, %v868, 0
          %v892 = vsel %vm430, %v869, 0
          %v895 = vsel %vm430, %v870, 0
          %v898 = vsel %vm430, %v871, 0
          %v901 = vsel %vm487, %v875, 0
          %903 = vmatpush.msra.mxu0 0.0
          %904 = vmatpush.msra.mxu0 0.0
          %905 = vmatpush.msra.mxu0 0.0
          %906 = vmatpush.msra.mxu0 0.0
          %907 = vmatpush.msra.mxu0 0.0
          %908 = vmatpush.msra.mxu0 0.0
          %909 = vmatpush.msra.mxu0 0.0
          %910 = vmatpush.msra.mxu0 0.0
          %911 = vmatpush.msra.mxu0 0.0
          %912 = vmatpush.msra.mxu0 0.0
          %913 = vmatpush.msra.mxu0 0.0
          %914 = vmatpush.msra.mxu0 0.0
          %915 = vmatpush.msra.mxu0 0.0
          %916 = vmatpush.msra.mxu0 0.0
          %917 = vmatpush.msra.mxu0 0.0
          %918 = vmatpush.msra.mxu0 %v901
          %919 = vmatmul.f32.gmra.mxu0 %v877
          %v920 = vpop.f32.mrf.mxu0
          %v921 = vadd.f32 0.0, %v920
          %922 = vmatmul.f32.gmra.mxu0 %v880
          %v923 = vpop.f32.mrf.mxu0
          %v924 = vadd.f32 0.0, %v923
          %925 = vmatmul.f32.gmra.mxu0 %v883
          %v926 = vpop.f32.mrf.mxu0
          %v927 = vadd.f32 0.0, %v926
          %928 = vmatmul.f32.gmra.mxu0 %v886
          %v929 = vpop.f32.mrf.mxu0
          %v930 = vadd.f32 0.0, %v929
          %931 = vmatmul.f32.gmra.mxu0 %v889
          %v932 = vpop.f32.mrf.mxu0
          %v933 = vadd.f32 0.0, %v932
          %934 = vmatmul.f32.gmra.mxu0 %v892
          %v935 = vpop.f32.mrf.mxu0
          %v936 = vadd.f32 0.0, %v935
          %937 = vmatmul.f32.gmra.mxu0 %v895
          %v938 = vpop.f32.mrf.mxu0
          %v939 = vadd.f32 0.0, %v938
          %940 = vmatmul.f32.gmra.mxu0 %v898
          %v941 = vpop.f32.mrf.mxu0
          %v942 = vadd.f32 0.0, %v941
          %943 = vdwg.mxu0
          %v944 = vadd.f32 %v856, %v921
          %v945 = vadd.f32 %v857, %v924
          %v946 = vadd.f32 %v858, %v927
          %v947 = vadd.f32 %v859, %v930
          %v948 = vadd.f32 %v860, %v933
          %v949 = vadd.f32 %v861, %v936
          %v950 = vadd.f32 %v862, %v939
          %v951 = vadd.f32 %v863, %v942
          %s952 = scalar_lea.vmem [#allocation2], 32
          %v953 = vld [vmem:[%s952] sm:$0xff]
          %v954 = vld [vmem:[%s952 + $0x10] sm:$0xff]
          %v955 = vld [vmem:[%s952 + $0x20] sm:$0xff]
          %v956 = vld [vmem:[%s952 + $0x30] sm:$0xff]
          %v957 = vld [vmem:[%s952 + $0x40] sm:$0xff]
          %v958 = vld [vmem:[%s952 + $0x50] sm:$0xff]
          %v959 = vld [vmem:[%s952 + $0x60] sm:$0xff]
          %v960 = vld [vmem:[%s952 + $0x70] sm:$0xff]
          %s961 = sadd.s32 %s447, 6
          %s962 = smul.u32 %s961, 4
          %s963 = scalar_lea.vmem %s1, %s962
          %v964 = vld [vmem:[%s963] sm:$0xf]
          %v966 = vsel %vm430, %v953, 0
          %v969 = vsel %vm430, %v954, 0
          %v972 = vsel %vm430, %v955, 0
          %v975 = vsel %vm430, %v956, 0
          %v978 = vsel %vm430, %v957, 0
          %v981 = vsel %vm430, %v958, 0
          %v984 = vsel %vm430, %v959, 0
          %v987 = vsel %vm430, %v960, 0
          %v990 = vsel %vm487, %v964, 0
          %992 = vmatpush.msra.mxu0 0.0
          %993 = vmatpush.msra.mxu0 0.0
          %994 = vmatpush.msra.mxu0 0.0
          %995 = vmatpush.msra.mxu0 0.0
          %996 = vmatpush.msra.mxu0 0.0
          %997 = vmatpush.msra.mxu0 0.0
          %998 = vmatpush.msra.mxu0 0.0
          %999 = vmatpush.msra.mxu0 0.0
          %1000 = vmatpush.msra.mxu0 0.0
          %1001 = vmatpush.msra.mxu0 0.0
          %1002 = vmatpush.msra.mxu0 0.0
          %1003 = vmatpush.msra.mxu0 0.0
          %1004 = vmatpush.msra.mxu0 0.0
          %1005 = vmatpush.msra.mxu0 0.0
          %1006 = vmatpush.msra.mxu0 0.0
          %1007 = vmatpush.msra.mxu0 %v990
          %1008 = vmatmul.f32.gmra.mxu0 %v966
          %v1009 = vpop.f32.mrf.mxu0
          %v1010 = vadd.f32 0.0, %v1009
          %1011 = vmatmul.f32.gmra.mxu0 %v969
          %v1012 = vpop.f32.mrf.mxu0
          %v1013 = vadd.f32 0.0, %v1012
          %1014 = vmatmul.f32.gmra.mxu0 %v972
          %v1015 = vpop.f32.mrf.mxu0
          %v1016 = vadd.f32 0.0, %v1015
          %1017 = vmatmul.f32.gmra.mxu0 %v975
          %v1018 = vpop.f32.mrf.mxu0
          %v1019 = vadd.f32 0.0, %v1018
          %1020 = vmatmul.f32.gmra.mxu0 %v978
          %v1021 = vpop.f32.mrf.mxu0
          %v1022 = vadd.f32 0.0, %v1021
          %1023 = vmatmul.f32.gmra.mxu0 %v981
          %v1024 = vpop.f32.mrf.mxu0
          %v1025 = vadd.f32 0.0, %v1024
          %1026 = vmatmul.f32.gmra.mxu0 %v984
          %v1027 = vpop.f32.mrf.mxu0
          %v1028 = vadd.f32 0.0, %v1027
          %1029 = vmatmul.f32.gmra.mxu0 %v987
          %v1030 = vpop.f32.mrf.mxu0
          %v1031 = vadd.f32 0.0, %v1030
          %1032 = vdwg.mxu0
          %v1033 = vadd.f32 %v944, %v1010
          %v1034 = vadd.f32 %v945, %v1013
          %v1035 = vadd.f32 %v946, %v1016
          %v1036 = vadd.f32 %v947, %v1019
          %v1037 = vadd.f32 %v948, %v1022
          %v1038 = vadd.f32 %v949, %v1025
          %v1039 = vadd.f32 %v950, %v1028
          %v1040 = vadd.f32 %v951, %v1031
          %v1041 = vld [vmem:[%s952 + $0x1] sm:$0xff]
          %v1042 = vld [vmem:[%s952 + $0x11] sm:$0xff]
          %v1043 = vld [vmem:[%s952 + $0x21] sm:$0xff]
          %v1044 = vld [vmem:[%s952 + $0x31] sm:$0xff]
          %v1045 = vld [vmem:[%s952 + $0x41] sm:$0xff]
          %v1046 = vld [vmem:[%s952 + $0x51] sm:$0xff]
          %v1047 = vld [vmem:[%s952 + $0x61] sm:$0xff]
          %v1048 = vld [vmem:[%s952 + $0x71] sm:$0xff]
          %s1049 = sadd.s32 %s447, 7
          %s1050 = smul.u32 %s1049, 4
          %s1051 = scalar_lea.vmem %s1, %s1050
          %v1052 = vld [vmem:[%s1051] sm:$0xf]
          %v1054 = vsel %vm430, %v1041, 0
          %v1057 = vsel %vm430, %v1042, 0
          %v1060 = vsel %vm430, %v1043, 0
          %v1063 = vsel %vm430, %v1044, 0
          %v1066 = vsel %vm430, %v1045, 0
          %v1069 = vsel %vm430, %v1046, 0
          %v1072 = vsel %vm430, %v1047, 0
          %v1075 = vsel %vm430, %v1048, 0
          %v1078 = vsel %vm487, %v1052, 0
          %1080 = vmatpush.msra.mxu0 0.0
          %1081 = vmatpush.msra.mxu0 0.0
          %1082 = vmatpush.msra.mxu0 0.0
          %1083 = vmatpush.msra.mxu0 0.0
          %1084 = vmatpush.msra.mxu0 0.0
          %1085 = vmatpush.msra.mxu0 0.0
          %1086 = vmatpush.msra.mxu0 0.0
          %1087 = vmatpush.msra.mxu0 0.0
          %1088 = vmatpush.msra.mxu0 0.0
          %1089 = vmatpush.msra.mxu0 0.0
          %1090 = vmatpush.msra.mxu0 0.0
          %1091 = vmatpush.msra.mxu0 0.0
          %1092 = vmatpush.msra.mxu0 0.0
          %1093 = vmatpush.msra.mxu0 0.0
          %1094 = vmatpush.msra.mxu0 0.0
          %1095 = vmatpush.msra.mxu0 %v1078
          %1096 = vmatmul.f32.gmra.mxu0 %v1054
          %v1097 = vpop.f32.mrf.mxu0
          %v1098 = vadd.f32 0.0, %v1097
          %1099 = vmatmul.f32.gmra.mxu0 %v1057
          %v1100 = vpop.f32.mrf.mxu0
          %v1101 = vadd.f32 0.0, %v1100
          %1102 = vmatmul.f32.gmra.mxu0 %v1060
          %v1103 = vpop.f32.mrf.mxu0
          %v1104 = vadd.f32 0.0, %v1103
          %1105 = vmatmul.f32.gmra.mxu0 %v1063
          %v1106 = vpop.f32.mrf.mxu0
          %v1107 = vadd.f32 0.0, %v1106
          %1108 = vmatmul.f32.gmra.mxu0 %v1066
          %v1109 = vpop.f32.mrf.mxu0
          %v1110 = vadd.f32 0.0, %v1109
          %1111 = vmatmul.f32.gmra.mxu0 %v1069
          %v1112 = vpop.f32.mrf.mxu0
          %v1113 = vadd.f32 0.0, %v1112
          %1114 = vmatmul.f32.gmra.mxu0 %v1072
          %v1115 = vpop.f32.mrf.mxu0
          %v1116 = vadd.f32 0.0, %v1115
          %1117 = vmatmul.f32.gmra.mxu0 %v1075
          %v1118 = vpop.f32.mrf.mxu0
          %v1119 = vadd.f32 0.0, %v1118
          %1120 = vdwg.mxu0
          %v1121 = vadd.f32 %v1033, %v1098
          %v1122 = vadd.f32 %v1034, %v1101
          %v1123 = vadd.f32 %v1035, %v1104
          %v1124 = vadd.f32 %v1036, %v1107
          %v1125 = vadd.f32 %v1037, %v1110
          %v1126 = vadd.f32 %v1038, %v1113
          %v1127 = vadd.f32 %v1039, %v1116
          %v1128 = vadd.f32 %v1040, %v1119
          %v1129 = vld [vmem:[%s952 + $0x2] sm:$0xff]
          %v1130 = vld [vmem:[%s952 + $0x12] sm:$0xff]
          %v1131 = vld [vmem:[%s952 + $0x22] sm:$0xff]
          %v1132 = vld [vmem:[%s952 + $0x32] sm:$0xff]
          %v1133 = vld [vmem:[%s952 + $0x42] sm:$0xff]
          %v1134 = vld [vmem:[%s952 + $0x52] sm:$0xff]
          %v1135 = vld [vmem:[%s952 + $0x62] sm:$0xff]
          %v1136 = vld [vmem:[%s952 + $0x72] sm:$0xff]
          %s1137 = sadd.s32 %s447, 8
          %s1138 = smul.u32 %s1137, 4
          %s1139 = scalar_lea.vmem %s1, %s1138
          %v1140 = vld [vmem:[%s1139] sm:$0xf]
          %v1142 = vsel %vm430, %v1129, 0
          %v1145 = vsel %vm430, %v1130, 0
          %v1148 = vsel %vm430, %v1131, 0
          %v1151 = vsel %vm430, %v1132, 0
          %v1154 = vsel %vm430, %v1133, 0
          %v1157 = vsel %vm430, %v1134, 0
          %v1160 = vsel %vm430, %v1135, 0
          %v1163 = vsel %vm430, %v1136, 0
          %v1166 = vsel %vm487, %v1140, 0
          %1168 = vmatpush.msra.mxu0 0.0
          %1169 = vmatpush.msra.mxu0 0.0
          %1170 = vmatpush.msra.mxu0 0.0
          %1171 = vmatpush.msra.mxu0 0.0
          %1172 = vmatpush.msra.mxu0 0.0
          %1173 = vmatpush.msra.mxu0 0.0
          %1174 = vmatpush.msra.mxu0 0.0
          %1175 = vmatpush.msra.mxu0 0.0
          %1176 = vmatpush.msra.mxu0 0.0
          %1177 = vmatpush.msra.mxu0 0.0
          %1178 = vmatpush.msra.mxu0 0.0
          %1179 = vmatpush.msra.mxu0 0.0
          %1180 = vmatpush.msra.mxu0 0.0
          %1181 = vmatpush.msra.mxu0 0.0
          %1182 = vmatpush.msra.mxu0 0.0
          %1183 = vmatpush.msra.mxu0 %v1166
          %1184 = vmatmul.f32.gmra.mxu0 %v1142
          %v1185 = vpop.f32.mrf.mxu0
          %v1186 = vadd.f32 0.0, %v1185
          %1187 = vmatmul.f32.gmra.mxu0 %v1145
          %v1188 = vpop.f32.mrf.mxu0
          %v1189 = vadd.f32 0.0, %v1188
          %1190 = vmatmul.f32.gmra.mxu0 %v1148
          %v1191 = vpop.f32.mrf.mxu0
          %v1192 = vadd.f32 0.0, %v1191
          %1193 = vmatmul.f32.gmra.mxu0 %v1151
          %v1194 = vpop.f32.mrf.mxu0
          %v1195 = vadd.f32 0.0, %v1194
          %1196 = vmatmul.f32.gmra.mxu0 %v1154
          %v1197 = vpop.f32.mrf.mxu0
          %v1198 = vadd.f32 0.0, %v1197
          %1199 = vmatmul.f32.gmra.mxu0 %v1157
          %v1200 = vpop.f32.mrf.mxu0
          %v1201 = vadd.f32 0.0, %v1200
          %1202 = vmatmul.f32.gmra.mxu0 %v1160
          %v1203 = vpop.f32.mrf.mxu0
          %v1204 = vadd.f32 0.0, %v1203
          %1205 = vmatmul.f32.gmra.mxu0 %v1163
          %v1206 = vpop.f32.mrf.mxu0
          %v1207 = vadd.f32 0.0, %v1206
          %1208 = vdwg.mxu0
          %v1209 = vadd.f32 %v1121, %v1186
          %v1210 = vadd.f32 %v1122, %v1189
          %v1211 = vadd.f32 %v1123, %v1192
          %v1212 = vadd.f32 %v1124, %v1195
          %v1213 = vadd.f32 %v1125, %v1198
          %v1214 = vadd.f32 %v1126, %v1201
          %v1215 = vadd.f32 %v1127, %v1204
          %v1216 = vadd.f32 %v1128, %v1207
          // Predicated region
          $region61: #{_lambda_.3} parent=59 // pred_check
            %p1217 = pneg %p379
          $region62: #{_lambda_.3} parent=59 // pred_check_branch
            %1219 = sbr.rel (%p1217) target = $region64
          $region63: #{_lambda_.3} parent=59 // pred_region
            %1220 = vst.msk [vmem:[#allocation3] sm:$0xff] %vm430, %v1209
            %1221 = vst.msk [vmem:[#allocation3 + $0x8] sm:$0xff] %vm430, %v1210
            %1222 = vst.msk [vmem:[#allocation3 + $0x10] sm:$0xff] %vm430, %v1211
            %1223 = vst.msk [vmem:[#allocation3 + $0x18] sm:$0xff] %vm430, %v1212
            %1224 = vst.msk [vmem:[#allocation3 + $0x20] sm:$0xff] %vm430, %v1213
            %1225 = vst.msk [vmem:[#allocation3 + $0x28] sm:$0xff] %vm430, %v1214
            %1226 = vst.msk [vmem:[#allocation3 + $0x30] sm:$0xff] %vm430, %v1215
            %1227 = vst.msk [vmem:[#allocation3 + $0x38] sm:$0xff] %vm430, %v1216
          $region64: #{_lambda_.3} parent=59 // pred_fallthru
            _
          %p1228 = scmp.ne.s32.totalorder %s30, 0
          // Predicated region
          $region65: #{_lambda_.3} parent=59 // pred_check
            %p1229 = pneg %p1228
          $region66: #{_lambda_.3} parent=59 // pred_check_branch
            %1231 = sbr.rel (%p1229) target = $region68
          $region67: #{_lambda_.3} parent=59 // pred_region
            %v1232 = vld [vmem:[#allocation3] sm:$0xff]
            %v1233 = vld [vmem:[#allocation3 + $0x8] sm:$0xff]
            %v1234 = vld [vmem:[#allocation3 + $0x10] sm:$0xff]
            %v1235 = vld [vmem:[#allocation3 + $0x18] sm:$0xff]
            %v1236 = vld [vmem:[#allocation3 + $0x20] sm:$0xff]
            %v1237 = vld [vmem:[#allocation3 + $0x28] sm:$0xff]
            %v1238 = vld [vmem:[#allocation3 + $0x30] sm:$0xff]
            %v1239 = vld [vmem:[#allocation3 + $0x38] sm:$0xff]
            %v1240 = vadd.f32 %v1232, %v1209
            %v1241 = vadd.f32 %v1233, %v1210
            %v1242 = vadd.f32 %v1234, %v1211
            %v1243 = vadd.f32 %v1235, %v1212
            %v1244 = vadd.f32 %v1236, %v1213
            %v1245 = vadd.f32 %v1237, %v1214
            %v1246 = vadd.f32 %v1238, %v1215
            %v1247 = vadd.f32 %v1239, %v1216
            %1248 = vst.msk [vmem:[#allocation3] sm:$0xff] %vm430, %v1240
            %1249 = vst.msk [vmem:[#allocation3 + $0x8] sm:$0xff] %vm430, %v1241
            %1250 = vst.msk [vmem:[#allocation3 + $0x10] sm:$0xff] %vm430, %v1242
            %1251 = vst.msk [vmem:[#allocation3 + $0x18] sm:$0xff] %vm430, %v1243
            %1252 = vst.msk [vmem:[#allocation3 + $0x20] sm:$0xff] %vm430, %v1244
            %1253 = vst.msk [vmem:[#allocation3 + $0x28] sm:$0xff] %vm430, %v1245
            %1254 = vst.msk [vmem:[#allocation3 + $0x30] sm:$0xff] %vm430, %v1246
            %1255 = vst.msk [vmem:[#allocation3 + $0x38] sm:$0xff] %vm430, %v1247
          $region68: #{_lambda_.3} parent=59 // pred_fallthru
            _
        $region60: #{_lambda_.3} parent=43 // pred_fallthru
          _
        %p1256 = scmp.eq.s32.totalorder %s30, 2
        // Predicated region
        $region69: #{_lambda_.3} parent=43 // pred_check
          %p1257 = pneg %p1256
        $region70: #{_lambda_.3} parent=43 // pred_check_branch
          %1259 = sbr.rel (%p1257) target = $region72
        $region71: #{_lambda_.3} parent=43 // pred_region
          %v1260 = vld [vmem:[#allocation3] sm:$0xff]
          %v1261 = vld [vmem:[#allocation3 + $0x8] sm:$0xff]
          %v1262 = vld [vmem:[#allocation3 + $0x10] sm:$0xff]
          %v1263 = vld [vmem:[#allocation3 + $0x18] sm:$0xff]
          %v1264 = vld [vmem:[#allocation3 + $0x20] sm:$0xff]
          %v1265 = vld [vmem:[#allocation3 + $0x28] sm:$0xff]
          %v1266 = vld [vmem:[#allocation3 + $0x30] sm:$0xff]
          %v1267 = vld [vmem:[#allocation3 + $0x38] sm:$0xff]
          %v1268 = vld [vmem:[%s2] sm:$0x1]
          %v1270 = vperm.slane %v1268, 0
          %v1272 = vadd.f32 %v1260, %v1270
          %v1273 = vadd.f32 %v1261, %v1270
          %v1274 = vadd.f32 %v1262, %v1270
          %v1275 = vadd.f32 %v1263, %v1270
          %v1276 = vadd.f32 %v1264, %v1270
          %v1277 = vadd.f32 %v1265, %v1270
          %v1278 = vadd.f32 %v1266, %v1270
          %v1279 = vadd.f32 %v1267, %v1270
          %v1280 = vmax.f32 %v1272, 0.0
          %v1281 = vmax.f32 %v1273, 0.0
          %v1282 = vmax.f32 %v1274, 0.0
          %v1283 = vmax.f32 %v1275, 0.0
          %v1284 = vmax.f32 %v1276, 0.0
          %v1285 = vmax.f32 %v1277, 0.0
          %v1286 = vmax.f32 %v1278, 0.0
          %v1287 = vmax.f32 %v1279, 0.0
          %v1288 = vld [vmem:[%s3] sm:$0xf]
          %v1289 = vld [vmem:[%s4] sm:$0x1]
          %v1291 = vperm.slane %v1289, 0
          %vm1293 = vcmask 31744
          %v1295 = vsel %vm1293, %v1280, 0
          %v1298 = vsel %vm1293, %v1281, 0
          %v1301 = vsel %vm1293, %v1282, 0
          %v1304 = vsel %vm1293, %v1283, 0
          %v1307 = vsel %vm1293, %v1284, 0
          %v1310 = vsel %vm1293, %v1285, 0
          %v1313 = vsel %vm1293, %v1286, 0
          %v1316 = vsel %vm1293, %v1287, 0
          %vm1318 = vcmask 1043456
          %v1320 = vsel %vm1318, %v1288, 0
          %1322 = vmatpush.msra.mxu0 0.0
          %1323 = vmatpush.msra.mxu0 0.0
          %1324 = vmatpush.msra.mxu0 0.0
          %1325 = vmatpush.msra.mxu0 0.0
          %1326 = vmatpush.msra.mxu0 0.0
          %1327 = vmatpush.msra.mxu0 0.0
          %1328 = vmatpush.msra.mxu0 0.0
          %1329 = vmatpush.msra.mxu0 0.0
          %1330 = vmatpush.msra.mxu0 0.0
          %1331 = vmatpush.msra.mxu0 0.0
          %1332 = vmatpush.msra.mxu0 0.0
          %1333 = vmatpush.msra.mxu0 0.0
          %1334 = vmatpush.msra.mxu0 0.0
          %1335 = vmatpush.msra.mxu0 0.0
          %1336 = vmatpush.msra.mxu0 0.0
          %1337 = vmatpush.msra.mxu0 %v1320
          %1338 = vmatmul.f32.gmra.mxu0 %v1295
          %v1339 = vpop.f32.mrf.mxu0
          %v1340 = vadd.f32 %v1291, %v1339
          %1341 = vmatmul.f32.gmra.mxu0 %v1298
          %v1342 = vpop.f32.mrf.mxu0
          %v1343 = vadd.f32 %v1291, %v1342
          %1344 = vmatmul.f32.gmra.mxu0 %v1301
          %v1345 = vpop.f32.mrf.mxu0
          %v1346 = vadd.f32 %v1291, %v1345
          %1347 = vmatmul.f32.gmra.mxu0 %v1304
          %v1348 = vpop.f32.mrf.mxu0
          %v1349 = vadd.f32 %v1291, %v1348
          %1350 = vmatmul.f32.gmra.mxu0 %v1307
          %v1351 = vpop.f32.mrf.mxu0
          %v1352 = vadd.f32 %v1291, %v1351
          %1353 = vmatmul.f32.gmra.mxu0 %v1310
          %v1354 = vpop.f32.mrf.mxu0
          %v1355 = vadd.f32 %v1291, %v1354
          %1356 = vmatmul.f32.gmra.mxu0 %v1313
          %v1357 = vpop.f32.mrf.mxu0
          %v1358 = vadd.f32 %v1291, %v1357
          %1359 = vmatmul.f32.gmra.mxu0 %v1316
          %v1360 = vpop.f32.mrf.mxu0
          %v1361 = vadd.f32 %v1291, %v1360
          %1362 = vdwg.mxu0
          %v1363 = vld [vmem:[%s307] sm:$0xff]
          %v1364 = vld [vmem:[%s307 + $0x8] sm:$0xff]
          %v1365 = vld [vmem:[%s307 + $0x10] sm:$0xff]
          %v1366 = vld [vmem:[%s307 + $0x18] sm:$0xff]
          %v1367 = vld [vmem:[%s307 + $0x20] sm:$0xff]
          %v1368 = vld [vmem:[%s307 + $0x28] sm:$0xff]
          %v1369 = vld [vmem:[%s307 + $0x30] sm:$0xff]
          %v1370 = vld [vmem:[%s307 + $0x38] sm:$0xff]
          %v1371 = vadd.f32 %v1340, %v1363
          %v1372 = vadd.f32 %v1343, %v1364
          %v1373 = vadd.f32 %v1346, %v1365
          %v1374 = vadd.f32 %v1349, %v1366
          %v1375 = vadd.f32 %v1352, %v1367
          %v1376 = vadd.f32 %v1355, %v1368
          %v1377 = vadd.f32 %v1358, %v1369
          %v1378 = vadd.f32 %v1361, %v1370
          %v1379 = vmax.f32 %v1371, 0.0
          %v1380 = vmax.f32 %v1372, 0.0
          %v1381 = vmax.f32 %v1373, 0.0
          %v1382 = vmax.f32 %v1374, 0.0
          %v1383 = vmax.f32 %v1375, 0.0
          %v1384 = vmax.f32 %v1376, 0.0
          %v1385 = vmax.f32 %v1377, 0.0
          %v1386 = vmax.f32 %v1378, 0.0
          %vm1387 = vcmask 130048
          %1388 = vst.msk [vmem:[%s351] sm:$0xff] %vm1387, %v1379
          %1389 = vst.msk [vmem:[%s351 + $0x8] sm:$0xff] %vm1387, %v1380
          %1390 = vst.msk [vmem:[%s351 + $0x10] sm:$0xff] %vm1387, %v1381
          %1391 = vst.msk [vmem:[%s351 + $0x18] sm:$0xff] %vm1387, %v1382
          %1392 = vst.msk [vmem:[%s351 + $0x20] sm:$0xff] %vm1387, %v1383
          %1393 = vst.msk [vmem:[%s351 + $0x28] sm:$0xff] %vm1387, %v1384
          %1394 = vst.msk [vmem:[%s351 + $0x30] sm:$0xff] %vm1387, %v1385
          %1395 = vst.msk [vmem:[%s351 + $0x38] sm:$0xff] %vm1387, %v1386
        $region72: #{_lambda_.3} parent=43 // pred_fallthru
          _
        %s1396 = sand.u32 %s204, 1
        %s1397 = scalar_lea.sflag [#allocation6], %s1396
        %s1398 = sand.u32 %s204, 1
        %s1399 = smul.addr %s1398, 64
        %s1400 = scalar_lea.vmem [#allocation7], %s1399
        // Predicated region
        $region73: #{_lambda_.3} parent=43 // pred_check
          %p1401 = pneg %p214
        $region74: #{_lambda_.3} parent=43 // pred_check_branch
          %1403 = sbr.rel (%p1401) target = $region76
        $region75: #{_lambda_.3} parent=43 // pred_region
          %1405 = vsyncadd %s1397, 0
          %s1406 = smul.addr %s29, 8
          %s1407 = smul.addr %s28, 64
          %s1408 = sadd.s32 %s1406, %s1407
          %s1409 = smul.addr %s1408, 8
          %s1410 = scalar_lea.hbm %s6, %s1409
          %s1411 = sshll.u32 %s1400, 4
          %s1412 = int_to_ptr.vmem [resolvable:$true] %s1411
          %s1413 = sshll.u32 %s1410, 4
          %s1414 = int_to_ptr.hbm [resolvable:$true] %s1413
          %1419 = dma.vmem_to_hbm [thread:$0]  %s1412, 1024, %s1414, %s1397, 128, 128, 8
        $region76: #{_lambda_.3} parent=43 // pred_fallthru
          _
      $region44: #{_lambda_.3} parent=5 // pred_fallthru
        _
      %p1420 = scmp.le.s32.totalorder 2, %s18
      // Predicated region
      $region77: #{_lambda_.3} parent=5 // pred_check
        %p1421 = pneg %p1420
      $region78: #{_lambda_.3} parent=5 // pred_check_branch
        %1423 = sbr.rel (%p1421) target = $region80
      $region79: #{_lambda_.3} parent=5 // pred_region
        %s1424 = ssub.s32 %s18, 2
        // Predicated region
        $region81: #{_lambda_.3} parent=79 // pred_check
          %p1425 = pneg %p220
        $region82: #{_lambda_.3} parent=79 // pred_check_branch
          %1427 = sbr.rel (%p1425) target = $region84
        $region83: #{_lambda_.3} parent=79 // pred_region
          %s1428 = sand.u32 %s205, 1
          %s1429 = scalar_lea.sflag [#allocation6], %s1428
          %s1430 = sand.u32 %s205, 1
          %s1431 = smul.addr %s1430, 64
          %s1432 = scalar_lea.vmem [#allocation7], %s1431
          %1434 = dma.done %s1429, 1024
        $region84: #{_lambda_.3} parent=79 // pred_fallthru
          _
      $region80: #{_lambda_.3} parent=5 // pred_fallthru
        _
    $region6: #{_lambda_.3} parent=1 // loop_footer
      %s22 = sadd.s32 1, %s18
    $region7: #{_lambda_.3} parent=1 // loop_footer_branch
      %17 = sbr.rel target = $region3
    $region8: #{_lambda_.3} parent=1 // loop_exit
      _
    %1435 = vsyncpa [#allocation5], 1
    %s1436 = scalar_lea.sflag [#allocation5], 1
    %1437 = vsyncpa %s1436, 1
    %1438 = vsyncpa [#allocation6], 1
    %s1439 = scalar_lea.sflag [#allocation6], 1
    %1440 = vsyncpa %s1439, 1

</llo_original>
